<compile_context>
chip_gen: v7x
topology: tpu7x:2x2x1
jax: 0.10.0
libtpu: 0.0.40
codegen_flags: <defaults>
</compile_context>

<pallas_src>
import functools
import math

import jax
import jax.numpy as jnp
import numpy as np
from jax.experimental import pallas as pl
from jax.experimental.pallas import tpu as pltpu

EPS = 1e-5  # nn.LayerNorm default


def _layer_norm_2pass(v, gamma, beta):
    """Row-wise LayerNorm over the last axis (two-pass variance; batched path)."""
    mean = jnp.mean(v, axis=-1, keepdims=True)
    var = jnp.mean((v - mean) ** 2, axis=-1, keepdims=True)
    return (v - mean) * jax.lax.rsqrt(var + EPS) * gamma + beta


def _gru_chunk_kernel(x_ref, hx_ref, wih_ref, bih_ref, gih_ref, beih_ref,
                      whh_ref, bhh_ref, ghh_ref, behh_ref,
                      out_ref,
                      gi_r_ref, gi_z_ref, gi_n_ref, h_ref,
                      *, mxu_dtype):
    TC, BB, D = x_ref.shape
    H = hx_ref.shape[1]
    c = pl.program_id(1)                       # time-chunk index (sequential)

    # -- initialize the persistent hidden-state carry on the first time chunk --
    @pl.when(c == 0)
    def _():
        h_ref[...] = hx_ref[...].astype(jnp.float32)

    # -- chunk-batched input projection + ln_ih: one MXU matmul per chunk --
    x2d = x_ref[...].reshape(TC * BB, D).astype(mxu_dtype)
    gi = jnp.dot(x2d, wih_ref[...].astype(mxu_dtype),
                 preferred_element_type=jnp.float32)
    gi = _layer_norm_2pass(gi + bih_ref[...], gih_ref[...], beih_ref[...])
    # Gate-major storage -> per-step reads are aligned leading-axis loads
    # (the lane-offset slicing happens once per chunk, off the critical path).
    gi_r_ref[...] = gi[:, 0 * H:1 * H].reshape(TC, BB, H)
    gi_z_ref[...] = gi[:, 1 * H:2 * H].reshape(TC, BB, H)
    gi_n_ref[...] = gi[:, 2 * H:3 * H].reshape(TC, BB, H)

    # -- hoisted, loop-invariant recurrent weights / ln_hh params --
    whh = whh_ref[...].astype(mxu_dtype)                       # (H, 3H)
    w_r, w_z, w_n = whh[:, 0 * H:1 * H], whh[:, 1 * H:2 * H], whh[:, 2 * H:3 * H]

    def split3(ref):
        v = ref[...]                                           # (1, 3H)
        return (jnp.broadcast_to(v[:, 0 * H:1 * H], (BB, H)),
                jnp.broadcast_to(v[:, 1 * H:2 * H], (BB, H)),
                jnp.broadcast_to(v[:, 2 * H:3 * H], (BB, H)))

    b_r, b_z, b_n = split3(bhh_ref)
    g_r, g_z, g_n = split3(ghh_ref)
    e_r, e_z, e_n = split3(behh_ref)
    inv3h = 1.0 / (3 * H)

    def step(t, h):
        hm = h.astype(mxu_dtype)
        # Per-gate matmuls keep the per-step path free of lane-offset slicing.
        pr = jnp.dot(hm, w_r, preferred_element_type=jnp.float32) + b_r
        pz = jnp.dot(hm, w_z, preferred_element_type=jnp.float32) + b_z
        pn = jnp.dot(hm, w_n, preferred_element_type=jnp.float32) + b_n
        # ln_hh over the concatenated 3H row; one-pass stats so the two lane
        # reductions are independent (latency-bound recurrence).
        s1 = (jnp.sum(pr, -1, keepdims=True) + jnp.sum(pz, -1, keepdims=True)
              + jnp.sum(pn, -1, keepdims=True))
        s2 = (jnp.sum(pr * pr, -1, keepdims=True)
              + jnp.sum(pz * pz, -1, keepdims=True)
              + jnp.sum(pn * pn, -1, keepdims=True))
        mean = s1 * inv3h
        inv = jax.lax.rsqrt(s2 * inv3h - mean * mean + EPS)
        h_r = (pr - mean) * inv * g_r + e_r
        h_z = (pz - mean) * inv * g_z + e_z
        h_n = (pn - mean) * inv * g_n + e_n

        r = jax.nn.sigmoid(gi_r_ref[t] + h_r)
        z = jax.nn.sigmoid(gi_z_ref[t] + h_z)
        n = jnp.tanh(gi_n_ref[t] + r * h_n)
        hy = n + z * (h - n)                                   # (BB, H)
        out_ref[t] = hy.astype(out_ref.dtype)                  # single aligned store
        return hy

    # Modest unroll (cap 8) keeps LLO visibility without imem/live-range blowup.
    h_fin = jax.lax.fori_loop(0, TC, step, h_ref[...], unroll=min(TC, 8))
    h_ref[...] = h_fin


def _pick_batch_block(b_pad):
    """Largest multiple of 8 dividing b_pad and <= max(8, b_pad // 2), so large
    batches get >=2 blocks for the 'parallel' axis (v7x 2nd TensorCore)."""
    cap = max(8, b_pad // 2)
    best = 8
    for cand in range(8, b_pad + 1, 8):
        if b_pad % cand == 0 and cand <= cap:
            best = cand
    return best


def _pick_time_chunk(t, bb, d, h, vmem_limit_bytes):
    """Largest divisor of t whose streamed-block + scratch footprint fits ~75%
    of the VMEM budget (2x-buffered x/out blocks, 3 gate scratches, weights)."""
    usable = int(vmem_limit_bytes * 0.75)
    per_t = 4 * bb * (2 * d + 2 * h + 3 * h)
    fixed = 8 * 3 * h * (d + h + 8) + 12 * bb * h + (2 << 20)
    tc_max = max(1, (usable - fixed) // per_t)
    best = 1
    for cand in range(1, t + 1):
        if t % cand == 0 and cand <= tc_max:
            best = cand
    return best


def layer_norm_gru_forward(x, hx, params, *, time_chunk=None, batch_block=None,
                           use_bf16_matmul=False,
                           vmem_limit_bytes=48 * 1024 * 1024):
    """x: (T, B, D_in), hx: (B, H). Returns (h_all (T,B,2H), h_last (B,2H))."""
    T, B, D = x.shape
    H = hx.shape[1]

    # Pad the batch to a sublane multiple (8): per-step MXU/VPU/XLU cost is flat
    # up to 8 rows, and it keeps every block and scratch sublane-aligned.
    B_pad = -(-B // 8) * 8
    if B_pad != B:
        x = jnp.pad(x, ((0, 0), (0, B_pad - B), (0, 0)))
        hx = jnp.pad(hx, ((0, B_pad - B), (0, 0)))

    BB = batch_block if batch_block is not None else _pick_batch_block(B_pad)
    assert B_pad % BB == 0 and BB % 8 == 0
    TC = time_chunk if time_chunk is not None else _pick_time_chunk(
        T, BB, D, H, vmem_limit_bytes)
    assert T % TC == 0
    grid = (B_pad // BB, T // TC)

    p = params  # forward-cell params only (grucell_b unused in forward)
    wih_t = p["weight_ih"].T.astype(x.dtype)         # (D, 3H)
    whh_t = p["weight_hh"].T.astype(x.dtype)         # (H, 3H)
    row = lambda a: a.reshape(1, 3 * H).astype(x.dtype)
    bih, bhh = row(p["bias_ih"]), row(p["bias_hh"])
    gih, beih = row(p["ln_ih_gamma"]), row(p["ln_ih_beta"])
    ghh, behh = row(p["ln_hh_gamma"]), row(p["ln_hh_beta"])

    # bf16 MXU operands (gate math stays f32): worthwhile on v6e/v7x for large
    # D/H; default off so the f32 1e-5 tolerance test passes.
    mxu_dtype = jnp.bfloat16 if use_bf16_matmul else jnp.float32
    kernel = functools.partial(_gru_chunk_kernel, mxu_dtype=mxu_dtype)

    const = lambda shape: pl.BlockSpec(shape, lambda b, c: (0,) * len(shape))
    in_specs = [
        pl.BlockSpec((TC, BB, D), lambda b, c: (c, b, 0)),   # x, streamed
        pl.BlockSpec((BB, H), lambda b, c: (b, 0)),          # hx
        const((D, 3 * H)),                                   # W_ih^T
        const((1, 3 * H)), const((1, 3 * H)), const((1, 3 * H)),   # b_ih, g_ih, be_ih
        const((H, 3 * H)),                                   # W_hh^T
        const((1, 3 * H)), const((1, 3 * H)), const((1, 3 * H)),   # b_hh, g_hh, be_hh
    ]
    out_spec = pl.BlockSpec((TC, BB, H), lambda b, c: (c, b, 0))

    cost = pl.CostEstimate(
        flops=2 * T * B_pad * (D + H) * 3 * H,
        transcendentals=4 * T * B_pad * H,
        bytes_accessed=4 * (T * B_pad * (D + H) + (D + H + 8) * 3 * H + B_pad * H),
    )

    hs_f = pl.pallas_call(
        kernel,
        out_shape=jax.ShapeDtypeStruct((T, B_pad, H), x.dtype),
        grid=grid,
        in_specs=in_specs,
        out_specs=out_spec,
        scratch_shapes=[
            pltpu.VMEM((TC, BB, H), jnp.float32),    # gi_r (gate-major chunk)
            pltpu.VMEM((TC, BB, H), jnp.float32),    # gi_z
            pltpu.VMEM((TC, BB, H), jnp.float32),    # gi_n
            pltpu.VMEM((BB, H), jnp.float32),        # persistent hidden-state carry
        ],
        compiler_params=pltpu.CompilerParams(
            dimension_semantics=("parallel", "arbitrary"),
            vmem_limit_bytes=vmem_limit_bytes),
        cost_estimate=cost,
    )(x, hx, wih_t, bih, gih, beih, whh_t, bhh, ghh, behh)

    hs_f = hs_f[:, :B]
    # hs_b == flip(hs_f, time) exactly (the reference feeds the forward chain's
    # state to the "backward" cell); the concat has to materialize regardless,
    # so do flip+concat once here instead of doubling kernel HBM writes.
    h_all = jnp.concatenate([hs_f, hs_f[::-1]], axis=2)
    h_last = h_all[T - 1]
    return h_all, h_last


# ----------------------------- pure-JAX reference -----------------------------
def _ref_cell(x, h, p):
    H = h.shape[1]
    gi = _layer_norm_2pass(x @ p["weight_ih"].T + p["bias_ih"],
                           p["ln_ih_gamma"][None, :], p["ln_ih_beta"][None, :])
    gh = _layer_norm_2pass(h @ p["weight_hh"].T + p["bias_hh"],
                           p["ln_hh_gamma"][None, :], p["ln_hh_beta"][None, :])
    i_r, i_i, i_n = gi[:, :H], gi[:, H:2 * H], gi[:, 2 * H:]
    h_r, h_i, h_n = gh[:, :H], gh[:, H:2 * H], gh[:, 2 * H:]
    r = jax.nn.sigmoid(i_r + h_r)
    z = jax.nn.sigmoid(i_i + h_i)
    n = jnp.tanh(i_n + r * h_n)
    return n + z * (h - n)


def _ref_forward(x, hx, p):
    T, B, _ = x.shape
    H = hx.shape[1]
    hs_f = jnp.zeros((T, B, H), x.dtype)
    hs_b = jnp.zeros((T, B, H), x.dtype)
    for t in range(T):
        xt = x[t]
        hf_prev = hs_f[t - 1] if t != 0 else hx
        hb_prev = hs_b[T - t] if t != 0 else hx
        hs_f = hs_f.at[t].set(_ref_cell(xt, hf_prev, p))
        hs_b = hs_b.at[T - t - 1].set(_ref_cell(xt, hb_prev, p))
    h_all = jnp.concatenate([hs_f, hs_b], axis=2)
    h_last = jnp.concatenate([hs_f[T - 1], hs_b[T - 1]], axis=1)
    return h_all, h_last


# ----------------------------------- main -----------------------------------
if __name__ == "__main__":
    T, B, D, H = 8, 2, 16, 32
    key = jax.random.PRNGKey(0)
    ks = jax.random.split(key, 12)
    bound = 1.0 / math.sqrt(H)

    def u(k, shape):
        return jax.random.uniform(k, shape, jnp.float32, -bound, bound)

    # forward-cell parameters (grucell_f)
    params_f = {
        "weight_ih": u(ks[0], (3 * H, D)),
        "weight_hh": u(ks[1], (3 * H, H)),
        "bias_ih": u(ks[2], (3 * H,)),
        "bias_hh": u(ks[3], (3 * H,)),
        "ln_ih_gamma": jnp.ones((3 * H,), jnp.float32),
        "ln_ih_beta": jnp.zeros((3 * H,), jnp.float32),
        "ln_hh_gamma": jnp.ones((3 * H,), jnp.float32),
        "ln_hh_beta": jnp.zeros((3 * H,), jnp.float32),
    }
    # grucell_b parameters exist in the module but are unused in its forward
    # (the reference calls grucell_f for both directions), so none are needed.

    x = jax.random.normal(ks[8], (T, B, D), jnp.float32)
    hx = jnp.zeros((B, H), jnp.float32)   # hx=None path of the module

    # time_chunk=4 -> two sequential time chunks: exercises the streamed
    # x/output pipeline and the cross-chunk hidden-state carry.
    h_all, h_last = layer_norm_gru_forward(x, hx, params_f, time_chunk=4)
    h_all = jax.block_until_ready(h_all)
    h_last = jax.block_until_ready(h_last)

    h_all_ref, h_last_ref = _ref_forward(x, hx, params_f)
    np.testing.assert_allclose(np.asarray(h_all), np.asarray(h_all_ref),
                               rtol=1e-5, atol=1e-5)
    np.testing.assert_allclose(np.asarray(h_last), np.asarray(h_last_ref),
                               rtol=1e-5, atol=1e-5)

    print("KERNEL_OK")
</pallas_src>

<mosaic_0001>
module attributes {stable_mosaic.version = 11 : i64} {
  func.func @_gru_chunk_kernel(%arg0: i32, %arg1: i32, %arg2: memref<4x8x16xf32, #tpu.memory_space<vmem>>, %arg3: memref<8x32xf32, #tpu.memory_space<vmem>>, %arg4: memref<16x96xf32, #tpu.memory_space<vmem>>, %arg5: memref<1x96xf32, #tpu.memory_space<vmem>>, %arg6: memref<1x96xf32, #tpu.memory_space<vmem>>, %arg7: memref<1x96xf32, #tpu.memory_space<vmem>>, %arg8: memref<32x96xf32, #tpu.memory_space<vmem>>, %arg9: memref<1x96xf32, #tpu.memory_space<vmem>>, %arg10: memref<1x96xf32, #tpu.memory_space<vmem>>, %arg11: memref<1x96xf32, #tpu.memory_space<vmem>>, %arg12: memref<4x8x32xf32, #tpu.memory_space<vmem>>, %arg13: memref<4x8x32xf32, #tpu.memory_space<vmem>>, %arg14: memref<4x8x32xf32, #tpu.memory_space<vmem>>, %arg15: memref<4x8x32xf32, #tpu.memory_space<vmem>>, %arg16: memref<8x32xf32, #tpu.memory_space<vmem>>) attributes {dimension_semantics = [#tpu.dimension_semantics<parallel>, #tpu.dimension_semantics<arbitrary>], iteration_bounds = array<i64: 1, 2>, scalar_prefetch = 0 : i64, scratch_operands = 4 : i64, tpu.core_type = #tpu.core_type<tc>, window_params = [{transform_indices = @transform_0, window_bounds = array<i64: 4, 8, 16>}, {transform_indices = @transform_1, window_bounds = array<i64: 8, 32>}, {pipeline_mode = #tpu.pipeline_mode<synchronous>, transform_indices = @transform_2, window_bounds = array<i64: 16, 96>}, {pipeline_mode = #tpu.pipeline_mode<synchronous>, transform_indices = @transform_3, window_bounds = array<i64: 1, 96>}, {pipeline_mode = #tpu.pipeline_mode<synchronous>, transform_indices = @transform_4, window_bounds = array<i64: 1, 96>}, {pipeline_mode = #tpu.pipeline_mode<synchronous>, transform_indices = @transform_5, window_bounds = array<i64: 1, 96>}, {pipeline_mode = #tpu.pipeline_mode<synchronous>, transform_indices = @transform_6, window_bounds = array<i64: 32, 96>}, {pipeline_mode = #tpu.pipeline_mode<synchronous>, transform_indices = @transform_7, window_bounds = array<i64: 1, 96>}, {pipeline_mode = #tpu.pipeline_mode<synchronous>, transform_indices = @transform_8, window_bounds = array<i64: 1, 96>}, {pipeline_mode = #tpu.pipeline_mode<synchronous>, transform_indices = @transform_9, window_bounds = array<i64: 1, 96>}, {transform_indices = @transform_10, window_bounds = array<i64: 4, 8, 32>}]} {
    %c0_i32 = arith.constant 0 : i32
    %0 = arith.cmpi eq, %arg1, %c0_i32 : i32
    %1 = arith.extui %0 : i1 to i32
    %c0_i32_0 = arith.constant 0 : i32
    %2 = arith.cmpi ne, %1, %c0_i32_0 : i32
    scf.if %2 {
      %c0_126 = arith.constant 0 : index
      %c0_127 = arith.constant 0 : index
      %411 = vector.load %arg3[%c0_126, %c0_127] : memref<8x32xf32, #tpu.memory_space<vmem>>, vector<8x32xf32>
      %c0_128 = arith.constant 0 : index
      %c0_129 = arith.constant 0 : index
      %412 = vector.load %arg16[%c0_128, %c0_129] : memref<8x32xf32, #tpu.memory_space<vmem>>, vector<8x32xf32>
      tpu.vector_store %arg16[%c0_128, %c0_129], %411 {strides = array<i32>} : memref<8x32xf32, #tpu.memory_space<vmem>>, vector<8x32xf32>,
    } else {
    }
    %c0 = arith.constant 0 : index
    %c0_1 = arith.constant 0 : index
    %c0_2 = arith.constant 0 : index
    %3 = vector.load %arg2[%c0, %c0_1, %c0_2] : memref<4x8x16xf32, #tpu.memory_space<vmem>>, vector<4x8x16xf32>
    %4 = vector.shape_cast %3 : vector<4x8x16xf32> to vector<32x16xf32>
    %c0_3 = arith.constant 0 : index
    %c0_4 = arith.constant 0 : index
    %5 = vector.load %arg4[%c0_3, %c0_4] : memref<16x96xf32, #tpu.memory_space<vmem>>, vector<16x96xf32>
    %cst = arith.constant dense<0.000000e+00> : vector<32x96xf32>
    %6 = tpu.matmul %4, %5, %cst {dimension_numbers = #tpu.dot_dimension_numbers<[1], [0], [0], [1], [0, 0, 1, 1], [], []>} : vector<32x16xf32>, vector<16x96xf32>, vector<32x96xf32> -> vector<32x96xf32>
    %c0_5 = arith.constant 0 : index
    %c0_6 = arith.constant 0 : index
    %7 = vector.load %arg5[%c0_5, %c0_6] : memref<1x96xf32, #tpu.memory_space<vmem>>, vector<1x96xf32>
    %8 = vector.broadcast %7 : vector<1x96xf32> to vector<32x96xf32>
    %9 = arith.addf %6, %8 : vector<32x96xf32>
    %c0_7 = arith.constant 0 : index
    %c0_8 = arith.constant 0 : index
    %10 = vector.load %arg6[%c0_7, %c0_8] : memref<1x96xf32, #tpu.memory_space<vmem>>, vector<1x96xf32>
    %c0_9 = arith.constant 0 : index
    %c0_10 = arith.constant 0 : index
    %11 = vector.load %arg7[%c0_9, %c0_10] : memref<1x96xf32, #tpu.memory_space<vmem>>, vector<1x96xf32>
    %cst_11 = arith.constant dense<0.000000e+00> : vector<32xf32>
    %12 = vector.multi_reduction <add>, %9, %cst_11 [1] : vector<32x96xf32> to vector<32xf32>
    %13 = vector.shape_cast %12 : vector<32xf32> to vector<32x1xf32>
    %cst_12 = arith.constant 9.600000e+01 : f32
    %14 = vector.broadcast %cst_12 : f32 to vector<32x1xf32>
    %15 = arith.divf %13, %14 : vector<32x1xf32>
    %16 = vector.broadcast %15 : vector<32x1xf32> to vector<32x96xf32>
    %17 = arith.subf %9, %16 : vector<32x96xf32>
    %18 = arith.mulf %17, %17 : vector<32x96xf32>
    %cst_13 = arith.constant dense<0.000000e+00> : vector<32xf32>
    %19 = vector.multi_reduction <add>, %18, %cst_13 [1] : vector<32x96xf32> to vector<32xf32>
    %20 = vector.shape_cast %19 : vector<32xf32> to vector<32x1xf32>
    %cst_14 = arith.constant 9.600000e+01 : f32
    %21 = vector.broadcast %cst_14 : f32 to vector<32x1xf32>
    %22 = arith.divf %20, %21 : vector<32x1xf32>
    %23 = vector.broadcast %15 : vector<32x1xf32> to vector<32x96xf32>
    %24 = arith.subf %9, %23 : vector<32x96xf32>
    %cst_15 = arith.constant 9.99999974E-6 : f32
    %25 = vector.broadcast %cst_15 : f32 to vector<32x1xf32>
    %26 = arith.addf %22, %25 : vector<32x1xf32>
    %27 = math.rsqrt %26 : vector<32x1xf32>
    %28 = vector.broadcast %27 : vector<32x1xf32> to vector<32x96xf32>
    %29 = arith.mulf %24, %28 : vector<32x96xf32>
    %30 = vector.broadcast %10 : vector<1x96xf32> to vector<32x96xf32>
    %31 = arith.mulf %29, %30 : vector<32x96xf32>
    %32 = vector.broadcast %11 : vector<1x96xf32> to vector<32x96xf32>
    %33 = arith.addf %31, %32 : vector<32x96xf32>
    %34 = vector.extract_strided_slice %33 {offsets = [0, 0], sizes = [32, 32], strides = [1, 1]} : vector<32x96xf32> to vector<32x32xf32>
    %35 = vector.shape_cast %34 : vector<32x32xf32> to vector<4x8x32xf32>
    %c0_16 = arith.constant 0 : index
    %c0_17 = arith.constant 0 : index
    %c0_18 = arith.constant 0 : index
    %36 = vector.load %arg13[%c0_16, %c0_17, %c0_18] : memref<4x8x32xf32, #tpu.memory_space<vmem>>, vector<4x8x32xf32>
    tpu.vector_store %arg13[%c0_16, %c0_17, %c0_18], %35 {strides = array<i32>} : memref<4x8x32xf32, #tpu.memory_space<vmem>>, vector<4x8x32xf32>,
    %37 = vector.extract_strided_slice %33 {offsets = [0, 32], sizes = [32, 32], strides = [1, 1]} : vector<32x96xf32> to vector<32x32xf32>
    %38 = vector.shape_cast %37 : vector<32x32xf32> to vector<4x8x32xf32>
    %c0_19 = arith.constant 0 : index
    %c0_20 = arith.constant 0 : index
    %c0_21 = arith.constant 0 : index
    %39 = vector.load %arg14[%c0_19, %c0_20, %c0_21] : memref<4x8x32xf32, #tpu.memory_space<vmem>>, vector<4x8x32xf32>
    tpu.vector_store %arg14[%c0_19, %c0_20, %c0_21], %38 {strides = array<i32>} : memref<4x8x32xf32, #tpu.memory_space<vmem>>, vector<4x8x32xf32>,
    %40 = vector.extract_strided_slice %33 {offsets = [0, 64], sizes = [32, 32], strides = [1, 1]} : vector<32x96xf32> to vector<32x32xf32>
    %41 = vector.shape_cast %40 : vector<32x32xf32> to vector<4x8x32xf32>
    %c0_22 = arith.constant 0 : index
    %c0_23 = arith.constant 0 : index
    %c0_24 = arith.constant 0 : index
    %42 = vector.load %arg15[%c0_22, %c0_23, %c0_24] : memref<4x8x32xf32, #tpu.memory_space<vmem>>, vector<4x8x32xf32>
    tpu.vector_store %arg15[%c0_22, %c0_23, %c0_24], %41 {strides = array<i32>} : memref<4x8x32xf32, #tpu.memory_space<vmem>>, vector<4x8x32xf32>,
    %c0_25 = arith.constant 0 : index
    %c0_26 = arith.constant 0 : index
    %43 = vector.load %arg8[%c0_25, %c0_26] : memref<32x96xf32, #tpu.memory_space<vmem>>, vector<32x96xf32>
    %44 = vector.extract_strided_slice %43 {offsets = [0, 0], sizes = [32, 32], strides = [1, 1]} : vector<32x96xf32> to vector<32x32xf32>
    %45 = vector.extract_strided_slice %43 {offsets = [0, 32], sizes = [32, 32], strides = [1, 1]} : vector<32x96xf32> to vector<32x32xf32>
    %46 = vector.extract_strided_slice %43 {offsets = [0, 64], sizes = [32, 32], strides = [1, 1]} : vector<32x96xf32> to vector<32x32xf32>
    %c0_27 = arith.constant 0 : index
    %c0_28 = arith.constant 0 : index
    %47 = vector.load %arg9[%c0_27, %c0_28] : memref<1x96xf32, #tpu.memory_space<vmem>>, vector<1x96xf32>
    %48 = vector.extract_strided_slice %47 {offsets = [0, 0], sizes = [1, 32], strides = [1, 1]} : vector<1x96xf32> to vector<1x32xf32>
    %49 = vector.shape_cast %48 : vector<1x32xf32> to vector<1x32xf32>
    %50 = vector.broadcast %49 : vector<1x32xf32> to vector<8x32xf32>
    %51 = vector.extract_strided_slice %47 {offsets = [0, 32], sizes = [1, 32], strides = [1, 1]} : vector<1x96xf32> to vector<1x32xf32>
    %52 = vector.shape_cast %51 : vector<1x32xf32> to vector<1x32xf32>
    %53 = vector.broadcast %52 : vector<1x32xf32> to vector<8x32xf32>
    %54 = vector.extract_strided_slice %47 {offsets = [0, 64], sizes = [1, 32], strides = [1, 1]} : vector<1x96xf32> to vector<1x32xf32>
    %55 = vector.shape_cast %54 : vector<1x32xf32> to vector<1x32xf32>
    %56 = vector.broadcast %55 : vector<1x32xf32> to vector<8x32xf32>
    %c0_29 = arith.constant 0 : index
    %c0_30 = arith.constant 0 : index
    %57 = vector.load %arg10[%c0_29, %c0_30] : memref<1x96xf32, #tpu.memory_space<vmem>>, vector<1x96xf32>
    %58 = vector.extract_strided_slice %57 {offsets = [0, 0], sizes = [1, 32], strides = [1, 1]} : vector<1x96xf32> to vector<1x32xf32>
    %59 = vector.shape_cast %58 : vector<1x32xf32> to vector<1x32xf32>
    %60 = vector.broadcast %59 : vector<1x32xf32> to vector<8x32xf32>
    %61 = vector.extract_strided_slice %57 {offsets = [0, 32], sizes = [1, 32], strides = [1, 1]} : vector<1x96xf32> to vector<1x32xf32>
    %62 = vector.shape_cast %61 : vector<1x32xf32> to vector<1x32xf32>
    %63 = vector.broadcast %62 : vector<1x32xf32> to vector<8x32xf32>
    %64 = vector.extract_strided_slice %57 {offsets = [0, 64], sizes = [1, 32], strides = [1, 1]} : vector<1x96xf32> to vector<1x32xf32>
    %65 = vector.shape_cast %64 : vector<1x32xf32> to vector<1x32xf32>
    %66 = vector.broadcast %65 : vector<1x32xf32> to vector<8x32xf32>
    %c0_31 = arith.constant 0 : index
    %c0_32 = arith.constant 0 : index
    %67 = vector.load %arg11[%c0_31, %c0_32] : memref<1x96xf32, #tpu.memory_space<vmem>>, vector<1x96xf32>
    %68 = vector.extract_strided_slice %67 {offsets = [0, 0], sizes = [1, 32], strides = [1, 1]} : vector<1x96xf32> to vector<1x32xf32>
    %69 = vector.shape_cast %68 : vector<1x32xf32> to vector<1x32xf32>
    %70 = vector.broadcast %69 : vector<1x32xf32> to vector<8x32xf32>
    %71 = vector.extract_strided_slice %67 {offsets = [0, 32], sizes = [1, 32], strides = [1, 1]} : vector<1x96xf32> to vector<1x32xf32>
    %72 = vector.shape_cast %71 : vector<1x32xf32> to vector<1x32xf32>
    %73 = vector.broadcast %72 : vector<1x32xf32> to vector<8x32xf32>
    %74 = vector.extract_strided_slice %67 {offsets = [0, 64], sizes = [1, 32], strides = [1, 1]} : vector<1x96xf32> to vector<1x32xf32>
    %75 = vector.shape_cast %74 : vector<1x32xf32> to vector<1x32xf32>
    %76 = vector.broadcast %75 : vector<1x32xf32> to vector<8x32xf32>
    %c0_33 = arith.constant 0 : index
    %c0_34 = arith.constant 0 : index
    %77 = vector.load %arg16[%c0_33, %c0_34] : memref<8x32xf32, #tpu.memory_space<vmem>>, vector<8x32xf32>
    %c0_i32_35 = arith.constant 0 : i32
    %cst_36 = arith.constant dense<0.000000e+00> : vector<8x32xf32>
    %78 = tpu.matmul %77, %44, %cst_36 {dimension_numbers = #tpu.dot_dimension_numbers<[1], [0], [0], [1], [0, 0, 1, 1], [], []>} : vector<8x32xf32>, vector<32x32xf32>, vector<8x32xf32> -> vector<8x32xf32>
    %79 = arith.addf %78, %50 : vector<8x32xf32>
    %cst_37 = arith.constant dense<0.000000e+00> : vector<8x32xf32>
    %80 = tpu.matmul %77, %45, %cst_37 {dimension_numbers = #tpu.dot_dimension_numbers<[1], [0], [0], [1], [0, 0, 1, 1], [], []>} : vector<8x32xf32>, vector<32x32xf32>, vector<8x32xf32> -> vector<8x32xf32>
    %81 = arith.addf %80, %53 : vector<8x32xf32>
    %cst_38 = arith.constant dense<0.000000e+00> : vector<8x32xf32>
    %82 = tpu.matmul %77, %46, %cst_38 {dimension_numbers = #tpu.dot_dimension_numbers<[1], [0], [0], [1], [0, 0, 1, 1], [], []>} : vector<8x32xf32>, vector<32x32xf32>, vector<8x32xf32> -> vector<8x32xf32>
    %83 = arith.addf %82, %56 : vector<8x32xf32>
    %cst_39 = arith.constant dense<0.000000e+00> : vector<8xf32>
    %84 = vector.multi_reduction <add>, %79, %cst_39 [1] : vector<8x32xf32> to vector<8xf32>
    %85 = vector.shape_cast %84 : vector<8xf32> to vector<8x1xf32>
    %cst_40 = arith.constant dense<0.000000e+00> : vector<8xf32>
    %86 = vector.multi_reduction <add>, %81, %cst_40 [1] : vector<8x32xf32> to vector<8xf32>
    %87 = vector.shape_cast %86 : vector<8xf32> to vector<8x1xf32>
    %88 = arith.addf %85, %87 : vector<8x1xf32>
    %cst_41 = arith.constant dense<0.000000e+00> : vector<8xf32>
    %89 = vector.multi_reduction <add>, %83, %cst_41 [1] : vector<8x32xf32> to vector<8xf32>
    %90 = vector.shape_cast %89 : vector<8xf32> to vector<8x1xf32>
    %91 = arith.addf %88, %90 : vector<8x1xf32>
    %92 = arith.mulf %79, %79 : vector<8x32xf32>
    %cst_42 = arith.constant dense<0.000000e+00> : vector<8xf32>
    %93 = vector.multi_reduction <add>, %92, %cst_42 [1] : vector<8x32xf32> to vector<8xf32>
    %94 = vector.shape_cast %93 : vector<8xf32> to vector<8x1xf32>
    %95 = arith.mulf %81, %81 : vector<8x32xf32>
    %cst_43 = arith.constant dense<0.000000e+00> : vector<8xf32>
    %96 = vector.multi_reduction <add>, %95, %cst_43 [1] : vector<8x32xf32> to vector<8xf32>
    %97 = vector.shape_cast %96 : vector<8xf32> to vector<8x1xf32>
    %98 = arith.addf %94, %97 : vector<8x1xf32>
    %99 = arith.mulf %83, %83 : vector<8x32xf32>
    %cst_44 = arith.constant dense<0.000000e+00> : vector<8xf32>
    %100 = vector.multi_reduction <add>, %99, %cst_44 [1] : vector<8x32xf32> to vector<8xf32>
    %101 = vector.shape_cast %100 : vector<8xf32> to vector<8x1xf32>
    %102 = arith.addf %98, %101 : vector<8x1xf32>
    %cst_45 = arith.constant 0.010416667 : f32
    %103 = vector.broadcast %cst_45 : f32 to vector<8x1xf32>
    %104 = arith.mulf %91, %103 : vector<8x1xf32>
    %cst_46 = arith.constant 0.010416667 : f32
    %105 = vector.broadcast %cst_46 : f32 to vector<8x1xf32>
    %106 = arith.mulf %102, %105 : vector<8x1xf32>
    %107 = arith.mulf %104, %104 : vector<8x1xf32>
    %108 = arith.subf %106, %107 : vector<8x1xf32>
    %cst_47 = arith.constant 9.99999974E-6 : f32
    %109 = vector.broadcast %cst_47 : f32 to vector<8x1xf32>
    %110 = arith.addf %108, %109 : vector<8x1xf32>
    %111 = math.rsqrt %110 : vector<8x1xf32>
    %112 = vector.broadcast %104 : vector<8x1xf32> to vector<8x32xf32>
    %113 = arith.subf %79, %112 : vector<8x32xf32>
    %114 = vector.broadcast %111 : vector<8x1xf32> to vector<8x32xf32>
    %115 = arith.mulf %113, %114 : vector<8x32xf32>
    %116 = arith.mulf %115, %60 : vector<8x32xf32>
    %117 = arith.addf %116, %70 : vector<8x32xf32>
    %118 = vector.broadcast %104 : vector<8x1xf32> to vector<8x32xf32>
    %119 = arith.subf %81, %118 : vector<8x32xf32>
    %120 = vector.broadcast %111 : vector<8x1xf32> to vector<8x32xf32>
    %121 = arith.mulf %119, %120 : vector<8x32xf32>
    %122 = arith.mulf %121, %63 : vector<8x32xf32>
    %123 = arith.addf %122, %73 : vector<8x32xf32>
    %124 = vector.broadcast %104 : vector<8x1xf32> to vector<8x32xf32>
    %125 = arith.subf %83, %124 : vector<8x32xf32>
    %126 = vector.broadcast %111 : vector<8x1xf32> to vector<8x32xf32>
    %127 = arith.mulf %125, %126 : vector<8x32xf32>
    %128 = arith.mulf %127, %66 : vector<8x32xf32>
    %129 = arith.addf %128, %76 : vector<8x32xf32>
    %130 = arith.index_cast %c0_i32_35 : i32 to index
    %c0_48 = arith.constant 0 : index
    %c0_49 = arith.constant 0 : index
    %131 = vector.load %arg13[%130, %c0_48, %c0_49] : memref<4x8x32xf32, #tpu.memory_space<vmem>>, vector<1x8x32xf32>
    %132 = vector.shape_cast %131 : vector<1x8x32xf32> to vector<8x32xf32>
    %133 = arith.addf %132, %117 : vector<8x32xf32>
    %134 = arith.negf %133 : vector<8x32xf32>
    %135 = math.exp %134 : vector<8x32xf32>
    %cst_50 = arith.constant 1.000000e+00 : f32
    %136 = vector.broadcast %cst_50 : f32 to vector<8x32xf32>
    %137 = arith.addf %136, %135 : vector<8x32xf32>
    %138 = arith.divf %136, %137 : vector<8x32xf32>
    %139 = arith.index_cast %c0_i32_35 : i32 to index
    %c0_51 = arith.constant 0 : index
    %c0_52 = arith.constant 0 : index
    %140 = vector.load %arg14[%139, %c0_51, %c0_52] : memref<4x8x32xf32, #tpu.memory_space<vmem>>, vector<1x8x32xf32>
    %141 = vector.shape_cast %140 : vector<1x8x32xf32> to vector<8x32xf32>
    %142 = arith.addf %141, %123 : vector<8x32xf32>
    %143 = arith.negf %142 : vector<8x32xf32>
    %144 = math.exp %143 : vector<8x32xf32>
    %cst_53 = arith.constant 1.000000e+00 : f32
    %145 = vector.broadcast %cst_53 : f32 to vector<8x32xf32>
    %146 = arith.addf %145, %144 : vector<8x32xf32>
    %147 = arith.divf %145, %146 : vector<8x32xf32>
    %148 = arith.index_cast %c0_i32_35 : i32 to index
    %c0_54 = arith.constant 0 : index
    %c0_55 = arith.constant 0 : index
    %149 = vector.load %arg15[%148, %c0_54, %c0_55] : memref<4x8x32xf32, #tpu.memory_space<vmem>>, vector<1x8x32xf32>
    %150 = vector.shape_cast %149 : vector<1x8x32xf32> to vector<8x32xf32>
    %151 = arith.mulf %138, %129 : vector<8x32xf32>
    %152 = arith.addf %150, %151 : vector<8x32xf32>
    %153 = math.tanh %152 : vector<8x32xf32>
    %154 = arith.subf %77, %153 : vector<8x32xf32>
    %155 = arith.mulf %147, %154 : vector<8x32xf32>
    %156 = arith.addf %153, %155 : vector<8x32xf32>
    %157 = arith.index_cast %c0_i32_35 : i32 to index
    %c0_56 = arith.constant 0 : index
    %c0_57 = arith.constant 0 : index
    %158 = vector.load %arg12[%157, %c0_56, %c0_57] : memref<4x8x32xf32, #tpu.memory_space<vmem>>, vector<1x8x32xf32>
    %159 = vector.shape_cast %158 : vector<1x8x32xf32> to vector<8x32xf32>
    %160 = vector.shape_cast %156 : vector<8x32xf32> to vector<1x8x32xf32>
    tpu.vector_store %arg12[%157, %c0_56, %c0_57], %160 {strides = array<i32>} : memref<4x8x32xf32, #tpu.memory_space<vmem>>, vector<1x8x32xf32>,
    %c1_i32 = arith.constant 1 : i32
    %cst_58 = arith.constant dense<0.000000e+00> : vector<8x32xf32>
    %161 = tpu.matmul %156, %44, %cst_58 {dimension_numbers = #tpu.dot_dimension_numbers<[1], [0], [0], [1], [0, 0, 1, 1], [], []>} : vector<8x32xf32>, vector<32x32xf32>, vector<8x32xf32> -> vector<8x32xf32>
    %162 = arith.addf %161, %50 : vector<8x32xf32>
    %cst_59 = arith.constant dense<0.000000e+00> : vector<8x32xf32>
    %163 = tpu.matmul %156, %45, %cst_59 {dimension_numbers = #tpu.dot_dimension_numbers<[1], [0], [0], [1], [0, 0, 1, 1], [], []>} : vector<8x32xf32>, vector<32x32xf32>, vector<8x32xf32> -> vector<8x32xf32>
    %164 = arith.addf %163, %53 : vector<8x32xf32>
    %cst_60 = arith.constant dense<0.000000e+00> : vector<8x32xf32>
    %165 = tpu.matmul %156, %46, %cst_60 {dimension_numbers = #tpu.dot_dimension_numbers<[1], [0], [0], [1], [0, 0, 1, 1], [], []>} : vector<8x32xf32>, vector<32x32xf32>, vector<8x32xf32> -> vector<8x32xf32>
    %166 = arith.addf %165, %56 : vector<8x32xf32>
    %cst_61 = arith.constant dense<0.000000e+00> : vector<8xf32>
    %167 = vector.multi_reduction <add>, %162, %cst_61 [1] : vector<8x32xf32> to vector<8xf32>
    %168 = vector.shape_cast %167 : vector<8xf32> to vector<8x1xf32>
    %cst_62 = arith.constant dense<0.000000e+00> : vector<8xf32>
    %169 = vector.multi_reduction <add>, %164, %cst_62 [1] : vector<8x32xf32> to vector<8xf32>
    %170 = vector.shape_cast %169 : vector<8xf32> to vector<8x1xf32>
    %171 = arith.addf %168, %170 : vector<8x1xf32>
    %cst_63 = arith.constant dense<0.000000e+00> : vector<8xf32>
    %172 = vector.multi_reduction <add>, %166, %cst_63 [1] : vector<8x32xf32> to vector<8xf32>
    %173 = vector.shape_cast %172 : vector<8xf32> to vector<8x1xf32>
    %174 = arith.addf %171, %173 : vector<8x1xf32>
    %175 = arith.mulf %162, %162 : vector<8x32xf32>
    %cst_64 = arith.constant dense<0.000000e+00> : vector<8xf32>
    %176 = vector.multi_reduction <add>, %175, %cst_64 [1] : vector<8x32xf32> to vector<8xf32>
    %177 = vector.shape_cast %176 : vector<8xf32> to vector<8x1xf32>
    %178 = arith.mulf %164, %164 : vector<8x32xf32>
    %cst_65 = arith.constant dense<0.000000e+00> : vector<8xf32>
    %179 = vector.multi_reduction <add>, %178, %cst_65 [1] : vector<8x32xf32> to vector<8xf32>
    %180 = vector.shape_cast %179 : vector<8xf32> to vector<8x1xf32>
    %181 = arith.addf %177, %180 : vector<8x1xf32>
    %182 = arith.mulf %166, %166 : vector<8x32xf32>
    %cst_66 = arith.constant dense<0.000000e+00> : vector<8xf32>
    %183 = vector.multi_reduction <add>, %182, %cst_66 [1] : vector<8x32xf32> to vector<8xf32>
    %184 = vector.shape_cast %183 : vector<8xf32> to vector<8x1xf32>
    %185 = arith.addf %181, %184 : vector<8x1xf32>
    %cst_67 = arith.constant 0.010416667 : f32
    %186 = vector.broadcast %cst_67 : f32 to vector<8x1xf32>
    %187 = arith.mulf %174, %186 : vector<8x1xf32>
    %cst_68 = arith.constant 0.010416667 : f32
    %188 = vector.broadcast %cst_68 : f32 to vector<8x1xf32>
    %189 = arith.mulf %185, %188 : vector<8x1xf32>
    %190 = arith.mulf %187, %187 : vector<8x1xf32>
    %191 = arith.subf %189, %190 : vector<8x1xf32>
    %cst_69 = arith.constant 9.99999974E-6 : f32
    %192 = vector.broadcast %cst_69 : f32 to vector<8x1xf32>
    %193 = arith.addf %191, %192 : vector<8x1xf32>
    %194 = math.rsqrt %193 : vector<8x1xf32>
    %195 = vector.broadcast %187 : vector<8x1xf32> to vector<8x32xf32>
    %196 = arith.subf %162, %195 : vector<8x32xf32>
    %197 = vector.broadcast %194 : vector<8x1xf32> to vector<8x32xf32>
    %198 = arith.mulf %196, %197 : vector<8x32xf32>
    %199 = arith.mulf %198, %60 : vector<8x32xf32>
    %200 = arith.addf %199, %70 : vector<8x32xf32>
    %201 = vector.broadcast %187 : vector<8x1xf32> to vector<8x32xf32>
    %202 = arith.subf %164, %201 : vector<8x32xf32>
    %203 = vector.broadcast %194 : vector<8x1xf32> to vector<8x32xf32>
    %204 = arith.mulf %202, %203 : vector<8x32xf32>
    %205 = arith.mulf %204, %63 : vector<8x32xf32>
    %206 = arith.addf %205, %73 : vector<8x32xf32>
    %207 = vector.broadcast %187 : vector<8x1xf32> to vector<8x32xf32>
    %208 = arith.subf %166, %207 : vector<8x32xf32>
    %209 = vector.broadcast %194 : vector<8x1xf32> to vector<8x32xf32>
    %210 = arith.mulf %208, %209 : vector<8x32xf32>
    %211 = arith.mulf %210, %66 : vector<8x32xf32>
    %212 = arith.addf %211, %76 : vector<8x32xf32>
    %213 = arith.index_cast %c1_i32 : i32 to index
    %c0_70 = arith.constant 0 : index
    %c0_71 = arith.constant 0 : index
    %214 = vector.load %arg13[%213, %c0_70, %c0_71] : memref<4x8x32xf32, #tpu.memory_space<vmem>>, vector<1x8x32xf32>
    %215 = vector.shape_cast %214 : vector<1x8x32xf32> to vector<8x32xf32>
    %216 = arith.addf %215, %200 : vector<8x32xf32>
    %217 = arith.negf %216 : vector<8x32xf32>
    %218 = math.exp %217 : vector<8x32xf32>
    %cst_72 = arith.constant 1.000000e+00 : f32
    %219 = vector.broadcast %cst_72 : f32 to vector<8x32xf32>
    %220 = arith.addf %219, %218 : vector<8x32xf32>
    %221 = arith.divf %219, %220 : vector<8x32xf32>
    %222 = arith.index_cast %c1_i32 : i32 to index
    %c0_73 = arith.constant 0 : index
    %c0_74 = arith.constant 0 : index
    %223 = vector.load %arg14[%222, %c0_73, %c0_74] : memref<4x8x32xf32, #tpu.memory_space<vmem>>, vector<1x8x32xf32>
    %224 = vector.shape_cast %223 : vector<1x8x32xf32> to vector<8x32xf32>
    %225 = arith.addf %224, %206 : vector<8x32xf32>
    %226 = arith.negf %225 : vector<8x32xf32>
    %227 = math.exp %226 : vector<8x32xf32>
    %cst_75 = arith.constant 1.000000e+00 : f32
    %228 = vector.broadcast %cst_75 : f32 to vector<8x32xf32>
    %229 = arith.addf %228, %227 : vector<8x32xf32>
    %230 = arith.divf %228, %229 : vector<8x32xf32>
    %231 = arith.index_cast %c1_i32 : i32 to index
    %c0_76 = arith.constant 0 : index
    %c0_77 = arith.constant 0 : index
    %232 = vector.load %arg15[%231, %c0_76, %c0_77] : memref<4x8x32xf32, #tpu.memory_space<vmem>>, vector<1x8x32xf32>
    %233 = vector.shape_cast %232 : vector<1x8x32xf32> to vector<8x32xf32>
    %234 = arith.mulf %221, %212 : vector<8x32xf32>
    %235 = arith.addf %233, %234 : vector<8x32xf32>
    %236 = math.tanh %235 : vector<8x32xf32>
    %237 = arith.subf %156, %236 : vector<8x32xf32>
    %238 = arith.mulf %230, %237 : vector<8x32xf32>
    %239 = arith.addf %236, %238 : vector<8x32xf32>
    %240 = arith.index_cast %c1_i32 : i32 to index
    %c0_78 = arith.constant 0 : index
    %c0_79 = arith.constant 0 : index
    %241 = vector.load %arg12[%240, %c0_78, %c0_79] : memref<4x8x32xf32, #tpu.memory_space<vmem>>, vector<1x8x32xf32>
    %242 = vector.shape_cast %241 : vector<1x8x32xf32> to vector<8x32xf32>
    %243 = vector.shape_cast %239 : vector<8x32xf32> to vector<1x8x32xf32>
    tpu.vector_store %arg12[%240, %c0_78, %c0_79], %243 {strides = array<i32>} : memref<4x8x32xf32, #tpu.memory_space<vmem>>, vector<1x8x32xf32>,
    %c2_i32 = arith.constant 2 : i32
    %cst_80 = arith.constant dense<0.000000e+00> : vector<8x32xf32>
    %244 = tpu.matmul %239, %44, %cst_80 {dimension_numbers = #tpu.dot_dimension_numbers<[1], [0], [0], [1], [0, 0, 1, 1], [], []>} : vector<8x32xf32>, vector<32x32xf32>, vector<8x32xf32> -> vector<8x32xf32>
    %245 = arith.addf %244, %50 : vector<8x32xf32>
    %cst_81 = arith.constant dense<0.000000e+00> : vector<8x32xf32>
    %246 = tpu.matmul %239, %45, %cst_81 {dimension_numbers = #tpu.dot_dimension_numbers<[1], [0], [0], [1], [0, 0, 1, 1], [], []>} : vector<8x32xf32>, vector<32x32xf32>, vector<8x32xf32> -> vector<8x32xf32>
    %247 = arith.addf %246, %53 : vector<8x32xf32>
    %cst_82 = arith.constant dense<0.000000e+00> : vector<8x32xf32>
    %248 = tpu.matmul %239, %46, %cst_82 {dimension_numbers = #tpu.dot_dimension_numbers<[1], [0], [0], [1], [0, 0, 1, 1], [], []>} : vector<8x32xf32>, vector<32x32xf32>, vector<8x32xf32> -> vector<8x32xf32>
    %249 = arith.addf %248, %56 : vector<8x32xf32>
    %cst_83 = arith.constant dense<0.000000e+00> : vector<8xf32>
    %250 = vector.multi_reduction <add>, %245, %cst_83 [1] : vector<8x32xf32> to vector<8xf32>
    %251 = vector.shape_cast %250 : vector<8xf32> to vector<8x1xf32>
    %cst_84 = arith.constant dense<0.000000e+00> : vector<8xf32>
    %252 = vector.multi_reduction <add>, %247, %cst_84 [1] : vector<8x32xf32> to vector<8xf32>
    %253 = vector.shape_cast %252 : vector<8xf32> to vector<8x1xf32>
    %254 = arith.addf %251, %253 : vector<8x1xf32>
    %cst_85 = arith.constant dense<0.000000e+00> : vector<8xf32>
    %255 = vector.multi_reduction <add>, %249, %cst_85 [1] : vector<8x32xf32> to vector<8xf32>
    %256 = vector.shape_cast %255 : vector<8xf32> to vector<8x1xf32>
    %257 = arith.addf %254, %256 : vector<8x1xf32>
    %258 = arith.mulf %245, %245 : vector<8x32xf32>
    %cst_86 = arith.constant dense<0.000000e+00> : vector<8xf32>
    %259 = vector.multi_reduction <add>, %258, %cst_86 [1] : vector<8x32xf32> to vector<8xf32>
    %260 = vector.shape_cast %259 : vector<8xf32> to vector<8x1xf32>
    %261 = arith.mulf %247, %247 : vector<8x32xf32>
    %cst_87 = arith.constant dense<0.000000e+00> : vector<8xf32>
    %262 = vector.multi_reduction <add>, %261, %cst_87 [1] : vector<8x32xf32> to vector<8xf32>
    %263 = vector.shape_cast %262 : vector<8xf32> to vector<8x1xf32>
    %264 = arith.addf %260, %263 : vector<8x1xf32>
    %265 = arith.mulf %249, %249 : vector<8x32xf32>
    %cst_88 = arith.constant dense<0.000000e+00> : vector<8xf32>
    %266 = vector.multi_reduction <add>, %265, %cst_88 [1] : vector<8x32xf32> to vector<8xf32>
    %267 = vector.shape_cast %266 : vector<8xf32> to vector<8x1xf32>
    %268 = arith.addf %264, %267 : vector<8x1xf32>
    %cst_89 = arith.constant 0.010416667 : f32
    %269 = vector.broadcast %cst_89 : f32 to vector<8x1xf32>
    %270 = arith.mulf %257, %269 : vector<8x1xf32>
    %cst_90 = arith.constant 0.010416667 : f32
    %271 = vector.broadcast %cst_90 : f32 to vector<8x1xf32>
    %272 = arith.mulf %268, %271 : vector<8x1xf32>
    %273 = arith.mulf %270, %270 : vector<8x1xf32>
    %274 = arith.subf %272, %273 : vector<8x1xf32>
    %cst_91 = arith.constant 9.99999974E-6 : f32
    %275 = vector.broadcast %cst_91 : f32 to vector<8x1xf32>
    %276 = arith.addf %274, %275 : vector<8x1xf32>
    %277 = math.rsqrt %276 : vector<8x1xf32>
    %278 = vector.broadcast %270 : vector<8x1xf32> to vector<8x32xf32>
    %279 = arith.subf %245, %278 : vector<8x32xf32>
    %280 = vector.broadcast %277 : vector<8x1xf32> to vector<8x32xf32>
    %281 = arith.mulf %279, %280 : vector<8x32xf32>
    %282 = arith.mulf %281, %60 : vector<8x32xf32>
    %283 = arith.addf %282, %70 : vector<8x32xf32>
    %284 = vector.broadcast %270 : vector<8x1xf32> to vector<8x32xf32>
    %285 = arith.subf %247, %284 : vector<8x32xf32>
    %286 = vector.broadcast %277 : vector<8x1xf32> to vector<8x32xf32>
    %287 = arith.mulf %285, %286 : vector<8x32xf32>
    %288 = arith.mulf %287, %63 : vector<8x32xf32>
    %289 = arith.addf %288, %73 : vector<8x32xf32>
    %290 = vector.broadcast %270 : vector<8x1xf32> to vector<8x32xf32>
    %291 = arith.subf %249, %290 : vector<8x32xf32>
    %292 = vector.broadcast %277 : vector<8x1xf32> to vector<8x32xf32>
    %293 = arith.mulf %291, %292 : vector<8x32xf32>
    %294 = arith.mulf %293, %66 : vector<8x32xf32>
    %295 = arith.addf %294, %76 : vector<8x32xf32>
    %296 = arith.index_cast %c2_i32 : i32 to index
    %c0_92 = arith.constant 0 : index
    %c0_93 = arith.constant 0 : index
    %297 = vector.load %arg13[%296, %c0_92, %c0_93] : memref<4x8x32xf32, #tpu.memory_space<vmem>>, vector<1x8x32xf32>
    %298 = vector.shape_cast %297 : vector<1x8x32xf32> to vector<8x32xf32>
    %299 = arith.addf %298, %283 : vector<8x32xf32>
    %300 = arith.negf %299 : vector<8x32xf32>
    %301 = math.exp %300 : vector<8x32xf32>
    %cst_94 = arith.constant 1.000000e+00 : f32
    %302 = vector.broadcast %cst_94 : f32 to vector<8x32xf32>
    %303 = arith.addf %302, %301 : vector<8x32xf32>
    %304 = arith.divf %302, %303 : vector<8x32xf32>
    %305 = arith.index_cast %c2_i32 : i32 to index
    %c0_95 = arith.constant 0 : index
    %c0_96 = arith.constant 0 : index
    %306 = vector.load %arg14[%305, %c0_95, %c0_96] : memref<4x8x32xf32, #tpu.memory_space<vmem>>, vector<1x8x32xf32>
    %307 = vector.shape_cast %306 : vector<1x8x32xf32> to vector<8x32xf32>
    %308 = arith.addf %307, %289 : vector<8x32xf32>
    %309 = arith.negf %308 : vector<8x32xf32>
    %310 = math.exp %309 : vector<8x32xf32>
    %cst_97 = arith.constant 1.000000e+00 : f32
    %311 = vector.broadcast %cst_97 : f32 to vector<8x32xf32>
    %312 = arith.addf %311, %310 : vector<8x32xf32>
    %313 = arith.divf %311, %312 : vector<8x32xf32>
    %314 = arith.index_cast %c2_i32 : i32 to index
    %c0_98 = arith.constant 0 : index
    %c0_99 = arith.constant 0 : index
    %315 = vector.load %arg15[%314, %c0_98, %c0_99] : memref<4x8x32xf32, #tpu.memory_space<vmem>>, vector<1x8x32xf32>
    %316 = vector.shape_cast %315 : vector<1x8x32xf32> to vector<8x32xf32>
    %317 = arith.mulf %304, %295 : vector<8x32xf32>
    %318 = arith.addf %316, %317 : vector<8x32xf32>
    %319 = math.tanh %318 : vector<8x32xf32>
    %320 = arith.subf %239, %319 : vector<8x32xf32>
    %321 = arith.mulf %313, %320 : vector<8x32xf32>
    %322 = arith.addf %319, %321 : vector<8x32xf32>
    %323 = arith.index_cast %c2_i32 : i32 to index
    %c0_100 = arith.constant 0 : index
    %c0_101 = arith.constant 0 : index
    %324 = vector.load %arg12[%323, %c0_100, %c0_101] : memref<4x8x32xf32, #tpu.memory_space<vmem>>, vector<1x8x32xf32>
    %325 = vector.shape_cast %324 : vector<1x8x32xf32> to vector<8x32xf32>
    %326 = vector.shape_cast %322 : vector<8x32xf32> to vector<1x8x32xf32>
    tpu.vector_store %arg12[%323, %c0_100, %c0_101], %326 {strides = array<i32>} : memref<4x8x32xf32, #tpu.memory_space<vmem>>, vector<1x8x32xf32>,
    %c3_i32 = arith.constant 3 : i32
    %cst_102 = arith.constant dense<0.000000e+00> : vector<8x32xf32>
    %327 = tpu.matmul %322, %44, %cst_102 {dimension_numbers = #tpu.dot_dimension_numbers<[1], [0], [0], [1], [0, 0, 1, 1], [], []>} : vector<8x32xf32>, vector<32x32xf32>, vector<8x32xf32> -> vector<8x32xf32>
    %328 = arith.addf %327, %50 : vector<8x32xf32>
    %cst_103 = arith.constant dense<0.000000e+00> : vector<8x32xf32>
    %329 = tpu.matmul %322, %45, %cst_103 {dimension_numbers = #tpu.dot_dimension_numbers<[1], [0], [0], [1], [0, 0, 1, 1], [], []>} : vector<8x32xf32>, vector<32x32xf32>, vector<8x32xf32> -> vector<8x32xf32>
    %330 = arith.addf %329, %53 : vector<8x32xf32>
    %cst_104 = arith.constant dense<0.000000e+00> : vector<8x32xf32>
    %331 = tpu.matmul %322, %46, %cst_104 {dimension_numbers = #tpu.dot_dimension_numbers<[1], [0], [0], [1], [0, 0, 1, 1], [], []>} : vector<8x32xf32>, vector<32x32xf32>, vector<8x32xf32> -> vector<8x32xf32>
    %332 = arith.addf %331, %56 : vector<8x32xf32>
    %cst_105 = arith.constant dense<0.000000e+00> : vector<8xf32>
    %333 = vector.multi_reduction <add>, %328, %cst_105 [1] : vector<8x32xf32> to vector<8xf32>
    %334 = vector.shape_cast %333 : vector<8xf32> to vector<8x1xf32>
    %cst_106 = arith.constant dense<0.000000e+00> : vector<8xf32>
    %335 = vector.multi_reduction <add>, %330, %cst_106 [1] : vector<8x32xf32> to vector<8xf32>
    %336 = vector.shape_cast %335 : vector<8xf32> to vector<8x1xf32>
    %337 = arith.addf %334, %336 : vector<8x1xf32>
    %cst_107 = arith.constant dense<0.000000e+00> : vector<8xf32>
    %338 = vector.multi_reduction <add>, %332, %cst_107 [1] : vector<8x32xf32> to vector<8xf32>
    %339 = vector.shape_cast %338 : vector<8xf32> to vector<8x1xf32>
    %340 = arith.addf %337, %339 : vector<8x1xf32>
    %341 = arith.mulf %328, %328 : vector<8x32xf32>
    %cst_108 = arith.constant dense<0.000000e+00> : vector<8xf32>
    %342 = vector.multi_reduction <add>, %341, %cst_108 [1] : vector<8x32xf32> to vector<8xf32>
    %343 = vector.shape_cast %342 : vector<8xf32> to vector<8x1xf32>
    %344 = arith.mulf %330, %330 : vector<8x32xf32>
    %cst_109 = arith.constant dense<0.000000e+00> : vector<8xf32>
    %345 = vector.multi_reduction <add>, %344, %cst_109 [1] : vector<8x32xf32> to vector<8xf32>
    %346 = vector.shape_cast %345 : vector<8xf32> to vector<8x1xf32>
    %347 = arith.addf %343, %346 : vector<8x1xf32>
    %348 = arith.mulf %332, %332 : vector<8x32xf32>
    %cst_110 = arith.constant dense<0.000000e+00> : vector<8xf32>
    %349 = vector.multi_reduction <add>, %348, %cst_110 [1] : vector<8x32xf32> to vector<8xf32>
    %350 = vector.shape_cast %349 : vector<8xf32> to vector<8x1xf32>
    %351 = arith.addf %347, %350 : vector<8x1xf32>
    %cst_111 = arith.constant 0.010416667 : f32
    %352 = vector.broadcast %cst_111 : f32 to vector<8x1xf32>
    %353 = arith.mulf %340, %352 : vector<8x1xf32>
    %cst_112 = arith.constant 0.010416667 : f32
    %354 = vector.broadcast %cst_112 : f32 to vector<8x1xf32>
    %355 = arith.mulf %351, %354 : vector<8x1xf32>
    %356 = arith.mulf %353, %353 : vector<8x1xf32>
    %357 = arith.subf %355, %356 : vector<8x1xf32>
    %cst_113 = arith.constant 9.99999974E-6 : f32
    %358 = vector.broadcast %cst_113 : f32 to vector<8x1xf32>
    %359 = arith.addf %357, %358 : vector<8x1xf32>
    %360 = math.rsqrt %359 : vector<8x1xf32>
    %361 = vector.broadcast %353 : vector<8x1xf32> to vector<8x32xf32>
    %362 = arith.subf %328, %361 : vector<8x32xf32>
    %363 = vector.broadcast %360 : vector<8x1xf32> to vector<8x32xf32>
    %364 = arith.mulf %362, %363 : vector<8x32xf32>
    %365 = arith.mulf %364, %60 : vector<8x32xf32>
    %366 = arith.addf %365, %70 : vector<8x32xf32>
    %367 = vector.broadcast %353 : vector<8x1xf32> to vector<8x32xf32>
    %368 = arith.subf %330, %367 : vector<8x32xf32>
    %369 = vector.broadcast %360 : vector<8x1xf32> to vector<8x32xf32>
    %370 = arith.mulf %368, %369 : vector<8x32xf32>
    %371 = arith.mulf %370, %63 : vector<8x32xf32>
    %372 = arith.addf %371, %73 : vector<8x32xf32>
    %373 = vector.broadcast %353 : vector<8x1xf32> to vector<8x32xf32>
    %374 = arith.subf %332, %373 : vector<8x32xf32>
    %375 = vector.broadcast %360 : vector<8x1xf32> to vector<8x32xf32>
    %376 = arith.mulf %374, %375 : vector<8x32xf32>
    %377 = arith.mulf %376, %66 : vector<8x32xf32>
    %378 = arith.addf %377, %76 : vector<8x32xf32>
    %379 = arith.index_cast %c3_i32 : i32 to index
    %c0_114 = arith.constant 0 : index
    %c0_115 = arith.constant 0 : index
    %380 = vector.load %arg13[%379, %c0_114, %c0_115] : memref<4x8x32xf32, #tpu.memory_space<vmem>>, vector<1x8x32xf32>
    %381 = vector.shape_cast %380 : vector<1x8x32xf32> to vector<8x32xf32>
    %382 = arith.addf %381, %366 : vector<8x32xf32>
    %383 = arith.negf %382 : vector<8x32xf32>
    %384 = math.exp %383 : vector<8x32xf32>
    %cst_116 = arith.constant 1.000000e+00 : f32
    %385 = vector.broadcast %cst_116 : f32 to vector<8x32xf32>
    %386 = arith.addf %385, %384 : vector<8x32xf32>
    %387 = arith.divf %385, %386 : vector<8x32xf32>
    %388 = arith.index_cast %c3_i32 : i32 to index
    %c0_117 = arith.constant 0 : index
    %c0_118 = arith.constant 0 : index
    %389 = vector.load %arg14[%388, %c0_117, %c0_118] : memref<4x8x32xf32, #tpu.memory_space<vmem>>, vector<1x8x32xf32>
    %390 = vector.shape_cast %389 : vector<1x8x32xf32> to vector<8x32xf32>
    %391 = arith.addf %390, %372 : vector<8x32xf32>
    %392 = arith.negf %391 : vector<8x32xf32>
    %393 = math.exp %392 : vector<8x32xf32>
    %cst_119 = arith.constant 1.000000e+00 : f32
    %394 = vector.broadcast %cst_119 : f32 to vector<8x32xf32>
    %395 = arith.addf %394, %393 : vector<8x32xf32>
    %396 = arith.divf %394, %395 : vector<8x32xf32>
    %397 = arith.index_cast %c3_i32 : i32 to index
    %c0_120 = arith.constant 0 : index
    %c0_121 = arith.constant 0 : index
    %398 = vector.load %arg15[%397, %c0_120, %c0_121] : memref<4x8x32xf32, #tpu.memory_space<vmem>>, vector<1x8x32xf32>
    %399 = vector.shape_cast %398 : vector<1x8x32xf32> to vector<8x32xf32>
    %400 = arith.mulf %387, %378 : vector<8x32xf32>
    %401 = arith.addf %399, %400 : vector<8x32xf32>
    %402 = math.tanh %401 : vector<8x32xf32>
    %403 = arith.subf %322, %402 : vector<8x32xf32>
    %404 = arith.mulf %396, %403 : vector<8x32xf32>
    %405 = arith.addf %402, %404 : vector<8x32xf32>
    %406 = arith.index_cast %c3_i32 : i32 to index
    %c0_122 = arith.constant 0 : index
    %c0_123 = arith.constant 0 : index
    %407 = vector.load %arg12[%406, %c0_122, %c0_123] : memref<4x8x32xf32, #tpu.memory_space<vmem>>, vector<1x8x32xf32>
    %408 = vector.shape_cast %407 : vector<1x8x32xf32> to vector<8x32xf32>
    %409 = vector.shape_cast %405 : vector<8x32xf32> to vector<1x8x32xf32>
    tpu.vector_store %arg12[%406, %c0_122, %c0_123], %409 {strides = array<i32>} : memref<4x8x32xf32, #tpu.memory_space<vmem>>, vector<1x8x32xf32>,
    %c4_i32 = arith.constant 4 : i32
    %c0_124 = arith.constant 0 : index
    %c0_125 = arith.constant 0 : index
    %410 = vector.load %arg16[%c0_124, %c0_125] : memref<8x32xf32, #tpu.memory_space<vmem>>, vector<8x32xf32>
    tpu.vector_store %arg16[%c0_124, %c0_125], %405 {strides = array<i32>} : memref<8x32xf32, #tpu.memory_space<vmem>>, vector<8x32xf32>,
    return
  }
  func.func @transform_0(%arg0: i32, %arg1: i32) -> (i32, i32, i32) {
    %c0_i32 = arith.constant 0 : i32
    %c0_i32_0 = arith.constant 0 : i32
    return %arg1, %arg0, %c0_i32 : i32, i32, i32
  }
  func.func @transform_1(%arg0: i32, %arg1: i32) -> (i32, i32) {
    %c0_i32 = arith.constant 0 : i32
    %c0_i32_0 = arith.constant 0 : i32
    return %arg0, %c0_i32 : i32, i32
  }
  func.func @transform_2(%arg0: i32, %arg1: i32) -> (i32, i32) {
    %c0_i32 = arith.constant 0 : i32
    %c0_i32_0 = arith.constant 0 : i32
    %c0_i32_1 = arith.constant 0 : i32
    return %c0_i32, %c0_i32_0 : i32, i32
  }
  func.func @transform_3(%arg0: i32, %arg1: i32) -> (i32, i32) {
    %c0_i32 = arith.constant 0 : i32
    %c0_i32_0 = arith.constant 0 : i32
    %c0_i32_1 = arith.constant 0 : i32
    return %c0_i32, %c0_i32_0 : i32, i32
  }
  func.func @transform_4(%arg0: i32, %arg1: i32) -> (i32, i32) {
    %c0_i32 = arith.constant 0 : i32
    %c0_i32_0 = arith.constant 0 : i32
    %c0_i32_1 = arith.constant 0 : i32
    return %c0_i32, %c0_i32_0 : i32, i32
  }
  func.func @transform_5(%arg0: i32, %arg1: i32) -> (i32, i32) {
    %c0_i32 = arith.constant 0 : i32
    %c0_i32_0 = arith.constant 0 : i32
    %c0_i32_1 = arith.constant 0 : i32
    return %c0_i32, %c0_i32_0 : i32, i32
  }
  func.func @transform_6(%arg0: i32, %arg1: i32) -> (i32, i32) {
    %c0_i32 = arith.constant 0 : i32
    %c0_i32_0 = arith.constant 0 : i32
    %c0_i32_1 = arith.constant 0 : i32
    return %c0_i32, %c0_i32_0 : i32, i32
  }
  func.func @transform_7(%arg0: i32, %arg1: i32) -> (i32, i32) {
    %c0_i32 = arith.constant 0 : i32
    %c0_i32_0 = arith.constant 0 : i32
    %c0_i32_1 = arith.constant 0 : i32
    return %c0_i32, %c0_i32_0 : i32, i32
  }
  func.func @transform_8(%arg0: i32, %arg1: i32) -> (i32, i32) {
    %c0_i32 = arith.constant 0 : i32
    %c0_i32_0 = arith.constant 0 : i32
    %c0_i32_1 = arith.constant 0 : i32
    return %c0_i32, %c0_i32_0 : i32, i32
  }
  func.func @transform_9(%arg0: i32, %arg1: i32) -> (i32, i32) {
    %c0_i32 = arith.constant 0 : i32
    %c0_i32_0 = arith.constant 0 : i32
    %c0_i32_1 = arith.constant 0 : i32
    return %c0_i32, %c0_i32_0 : i32, i32
  }
  func.func @transform_10(%arg0: i32, %arg1: i32) -> (i32, i32, i32) {
    %c0_i32 = arith.constant 0 : i32
    %c0_i32_0 = arith.constant 0 : i32
    return %arg1, %arg0, %c0_i32 : i32, i32, i32
  }
}

</mosaic_0001>

<llo_original>
// kernel: tpu_custom_call.1
$region0: #{tpu_custom_call.1}
  #allocation0 [shape = 'u32[]', space=smem, size = 0x4, offset = 0x4, fixed_abs, tag = 'smem constant byte address 0x4 - core index']
  #allocation1 [shape = 'u32[144,128]{1,0:T(1,128)}', space=vmem, size = 0x12000, scoped, tag = 'internal scratch']
  #allocation2 [shape = 'f32[4,8,32]{2,1,0:T(8,128)}', space=vmem, size = 0x4000, scoped, tag = 'scratch operand']
  #allocation3 [shape = 'f32[4,8,32]{2,1,0:T(8,128)}', space=vmem, size = 0x4000, scoped, tag = 'scratch operand']
  #allocation4 [shape = 'f32[4,8,32]{2,1,0:T(8,128)}', space=vmem, size = 0x4000, scoped, tag = 'scratch operand']
  #allocation5 [shape = 'f32[8,32]{1,0:T(8,128)}', space=vmem, size = 0x1000, scoped, tag = 'scratch operand']
  %s0 = inlined_call_operand.hbm [shape: f32[8,8,16], index: 0, kind: input, shape index: {}]
  %s1 = inlined_call_operand.hbm [shape: f32[8,32], index: 1, kind: input, shape index: {}]
  %s2 = inlined_call_operand.hbm [shape: f32[16,96], index: 2, kind: input, shape index: {}]
  %s3 = inlined_call_operand.vmem [shape: f32[1,96], index: 3, kind: input, shape index: {}]
  %s4 = inlined_call_operand.vmem [shape: f32[1,96], index: 4, kind: input, shape index: {}]
  %s5 = inlined_call_operand.vmem [shape: f32[1,96], index: 5, kind: input, shape index: {}]
  %s6 = inlined_call_operand.hbm [shape: f32[32,96], index: 6, kind: input, shape index: {}]
  %s7 = inlined_call_operand.vmem [shape: f32[1,96], index: 7, kind: input, shape index: {}]
  %s8 = inlined_call_operand.vmem [shape: f32[1,96], index: 8, kind: input, shape index: {}]
  %s9 = inlined_call_operand.vmem [shape: f32[1,96], index: 9, kind: input, shape index: {}]
  %s10 = inlined_call_operand.hbm [shape: f32[8,8,32], index: 10, kind: output, shape index: {}]
  %s11 = sld [smem:[#allocation0]]
  $region93: #{tpu_custom_call.1} parent=0
    _
  %s13 = ssub.s32 1, %s11
  %s14 = scalar_select 0, %s13, %s11
  $region1: #{tpu_custom_call.1} parent=0
    #allocation6 [shape = 'u8[32768]{0}', space=vmem, size = 0x8000, scoped, tag = 'input window, operand 0']
    #allocation7 [shape = 's32[2]{0}', space=sflag, size = 0x8, scoped, tag = 'scoped memory for tpu_custom_call.1']
    #allocation8 [shape = 's32[2]{0}', space=sflag, size = 0x8, scoped, tag = 'scoped memory for tpu_custom_call.1']
    #allocation9 [shape = 'u8[4096]{0}', space=vmem, size = 0x1000, scoped, tag = 'input window, operand 1, single buffered']
    #allocation10 [shape = 's32[1]{0}', space=sflag, size = 0x4, scoped, tag = 'scoped memory for tpu_custom_call.1']
    #allocation11 [shape = 'u8[8192]{0}', space=vmem, size = 0x2000, scoped, tag = 'input window, operand 2, single buffered']
    #allocation12 [shape = 'u8[16384]{0}', space=vmem, size = 0x4000, scoped, tag = 'input window, operand 6, single buffered']
    #allocation13 [shape = 's32[1]{0}', space=sflag, size = 0x4, scoped, tag = 'scoped memory for tpu_custom_call.1']
    #allocation14 [shape = 'u8[32768]{0}', space=vmem, size = 0x8000, scoped, tag = 'output window, operand 0']
    %15 = vsyncpa [#allocation7], 0
    %s16 = scalar_lea.sflag [#allocation7], 1
    %17 = vsyncpa %s16, 0
    %18 = vsyncpa [#allocation10], 0
    %19 = vsyncpa [#allocation13], 0
    %20 = vsyncpa [#allocation8], 0
    %s21 = scalar_lea.sflag [#allocation8], 1
    %22 = vsyncpa %s21, 0
    loop: start=0, step=1, limit=4
    $region2: #{tpu_custom_call.1} parent=1 // loop_pre_header
      _
    $region3: #{tpu_custom_call.1} parent=1 // loop_header
      %s24 = sphi 0, %s28
      %p25 = scmp.ge.s32.totalorder %s24, 4
      %s31 = sphi 0, %s43
      %s32 = sphi 0, %s39
      %s33 = sphi 0, %s31
      %s34 = sphi 0, %s32
      %s35 = sphi 0, %s33
      %s36 = sphi 0, %s34
      %s48 = sphi 0, %s50
      %s51 = sphi 0, %s48
      %s52 = sphi 0, %s51
      %s68 = sphi 0, %s52
      %s74 = sphi 0, %s76
      %s77 = sphi 0, %s74
      %s78 = sphi 0, %s77
      %s94 = sphi 0, %s78
      %s98 = sphi 0, %s98
      %s100 = sphi 0, %s98
      %s101 = sphi 0, %s100
      %s115 = sphi 0, %s101
      %s119 = sphi 0, %s119
      %s121 = sphi 0, %s119
      %s122 = sphi 0, %s121
      %s136 = sphi 0, %s122
      %s140 = sphi 0, %s140
      %s142 = sphi 0, %s140
      %s143 = sphi 0, %s142
      %s157 = sphi 0, %s143
      %s161 = sphi 0, %s161
      %s163 = sphi 0, %s161
      %s164 = sphi 0, %s163
      %s178 = sphi 0, %s164
      %s182 = sphi 0, %s182
      %s184 = sphi 0, %s182
      %s185 = sphi 0, %s184
      %s199 = sphi 0, %s185
      %s203 = sphi 0, %s203
      %s205 = sphi 0, %s203
      %s206 = sphi 0, %s205
      %s220 = sphi 0, %s206
      %s224 = sphi 0, %s224
      %s226 = sphi 0, %s224
      %s227 = sphi 0, %s226
      %s241 = sphi 0, %s227
      %s245 = sphi 0, %s245
      %s247 = sphi 0, %s245
      %s248 = sphi 0, %s247
      %s262 = sphi 0, %s248
      %s270 = sphi 0, %s272
      %s273 = sphi 0, %s270
      %s274 = sphi 0, %s273
      %s290 = sphi 0, %s274
    $region4: #{tpu_custom_call.1} parent=1 // loop_header_branch
      %27 = sbr.rel (%p25) target = $region8
    $region5: #{tpu_custom_call.1} parent=1 // loop_body
      %s29 = ssub.s32 %s24, 1
      %s30 = ssub.s32 %s24, 2
      %s37 = sadd.s32 1, %s32
      %p38 = scmp.ge.s32.totalorder %s37, 2
      %s39 = scalar_select %p38, 0, %s37
      %s40 = sadd.s32 1, %s31
      %s41 = scalar_select %p38, %s40, %s31
      %p42 = scmp.ge.s32.totalorder %s41, 1
      %s43 = scalar_select %p42, 0, %s41
      %s44 = ssub.s32 %s32, %s39
      %s45 = ssub.s32 %s31, %s43
      %s46 = sor.u32 %s44, %s45
      %p47 = scmp.eq.s32.totalorder %s46, 0
      %s49 = sadd.s32 %s48, 1
      %s50 = scalar_select %p47, %s48, %s49
      %p53 = pneg %p47
      %p54 = scmp.eq.s32.totalorder %s24, 1
      %p55 = por %p53, %p54
      %p56 = scmp.ne.s32.totalorder %s48, %s51
      %p57 = scmp.eq.s32.totalorder %s24, 0
      %p58 = por %p56, %p57
      %p59 = scmp.ne.s32.totalorder %s48, %s51
      %p60 = scmp.eq.s32.totalorder %s29, 1
      %p61 = por %p59, %p60
      %p62 = scmp.ne.s32.totalorder %s51, %s52
      %p63 = scmp.eq.s32.totalorder %s29, 0
      %p64 = por %p62, %p63
      %p65 = scmp.ne.s32.totalorder %s51, %s52
      %p66 = scmp.eq.s32.totalorder %s30, 1
      %p67 = por %p65, %p66
      %p69 = scmp.ne.s32.totalorder %s52, %s68
      %p70 = scmp.eq.s32.totalorder %s30, 0
      %p71 = por %p69, %p70
      %s72 = ssub.s32 %s31, %s43
      %p73 = scmp.eq.s32.totalorder %s72, 0
      %s75 = sadd.s32 %s74, 1
      %s76 = scalar_select %p73, %s74, %s75
      %p79 = pneg %p73
      %p80 = scmp.eq.s32.totalorder %s24, 1
      %p81 = por %p79, %p80
      %p82 = scmp.ne.s32.totalorder %s74, %s77
      %p83 = scmp.eq.s32.totalorder %s24, 0
      %p84 = por %p82, %p83
      %p85 = scmp.ne.s32.totalorder %s74, %s77
      %p86 = scmp.eq.s32.totalorder %s29, 1
      %p87 = por %p85, %p86
      %p88 = scmp.ne.s32.totalorder %s77, %s78
      %p89 = scmp.eq.s32.totalorder %s29, 0
      %p90 = por %p88, %p89
      %p91 = scmp.ne.s32.totalorder %s77, %s78
      %p92 = scmp.eq.s32.totalorder %s30, 1
      %p93 = por %p91, %p92
      %p95 = scmp.ne.s32.totalorder %s78, %s94
      %p96 = scmp.eq.s32.totalorder %s30, 0
      %p97 = por %p95, %p96
      %s99 = sadd.s32 %s98, 1
      %p102 = scmp.eq.s32.totalorder %s24, 1
      %p103 = scmp.ne.s32.totalorder %s98, %s100
      %p104 = scmp.eq.s32.totalorder %s24, 0
      %p105 = por %p103, %p104
      %p106 = scmp.ne.s32.totalorder %s98, %s100
      %p107 = scmp.eq.s32.totalorder %s29, 1
      %p108 = por %p106, %p107
      %p109 = scmp.ne.s32.totalorder %s100, %s101
      %p110 = scmp.eq.s32.totalorder %s29, 0
      %p111 = por %p109, %p110
      %p112 = scmp.ne.s32.totalorder %s100, %s101
      %p113 = scmp.eq.s32.totalorder %s30, 1
      %p114 = por %p112, %p113
      %p116 = scmp.ne.s32.totalorder %s101, %s115
      %p117 = scmp.eq.s32.totalorder %s30, 0
      %p118 = por %p116, %p117
      %s120 = sadd.s32 %s119, 1
      %p123 = scmp.eq.s32.totalorder %s24, 1
      %p124 = scmp.ne.s32.totalorder %s119, %s121
      %p125 = scmp.eq.s32.totalorder %s24, 0
      %p126 = por %p124, %p125
      %p127 = scmp.ne.s32.totalorder %s119, %s121
      %p128 = scmp.eq.s32.totalorder %s29, 1
      %p129 = por %p127, %p128
      %p130 = scmp.ne.s32.totalorder %s121, %s122
      %p131 = scmp.eq.s32.totalorder %s29, 0
      %p132 = por %p130, %p131
      %p133 = scmp.ne.s32.totalorder %s121, %s122
      %p134 = scmp.eq.s32.totalorder %s30, 1
      %p135 = por %p133, %p134
      %p137 = scmp.ne.s32.totalorder %s122, %s136
      %p138 = scmp.eq.s32.totalorder %s30, 0
      %p139 = por %p137, %p138
      %s141 = sadd.s32 %s140, 1
      %p144 = scmp.eq.s32.totalorder %s24, 1
      %p145 = scmp.ne.s32.totalorder %s140, %s142
      %p146 = scmp.eq.s32.totalorder %s24, 0
      %p147 = por %p145, %p146
      %p148 = scmp.ne.s32.totalorder %s140, %s142
      %p149 = scmp.eq.s32.totalorder %s29, 1
      %p150 = por %p148, %p149
      %p151 = scmp.ne.s32.totalorder %s142, %s143
      %p152 = scmp.eq.s32.totalorder %s29, 0
      %p153 = por %p151, %p152
      %p154 = scmp.ne.s32.totalorder %s142, %s143
      %p155 = scmp.eq.s32.totalorder %s30, 1
      %p156 = por %p154, %p155
      %p158 = scmp.ne.s32.totalorder %s143, %s157
      %p159 = scmp.eq.s32.totalorder %s30, 0
      %p160 = por %p158, %p159
      %s162 = sadd.s32 %s161, 1
      %p165 = scmp.eq.s32.totalorder %s24, 1
      %p166 = scmp.ne.s32.totalorder %s161, %s163
      %p167 = scmp.eq.s32.totalorder %s24, 0
      %p168 = por %p166, %p167
      %p169 = scmp.ne.s32.totalorder %s161, %s163
      %p170 = scmp.eq.s32.totalorder %s29, 1
      %p171 = por %p169, %p170
      %p172 = scmp.ne.s32.totalorder %s163, %s164
      %p173 = scmp.eq.s32.totalorder %s29, 0
      %p174 = por %p172, %p173
      %p175 = scmp.ne.s32.totalorder %s163, %s164
      %p176 = scmp.eq.s32.totalorder %s30, 1
      %p177 = por %p175, %p176
      %p179 = scmp.ne.s32.totalorder %s164, %s178
      %p180 = scmp.eq.s32.totalorder %s30, 0
      %p181 = por %p179, %p180
      %s183 = sadd.s32 %s182, 1
      %p186 = scmp.eq.s32.totalorder %s24, 1
      %p187 = scmp.ne.s32.totalorder %s182, %s184
      %p188 = scmp.eq.s32.totalorder %s24, 0
      %p189 = por %p187, %p188
      %p190 = scmp.ne.s32.totalorder %s182, %s184
      %p191 = scmp.eq.s32.totalorder %s29, 1
      %p192 = por %p190, %p191
      %p193 = scmp.ne.s32.totalorder %s184, %s185
      %p194 = scmp.eq.s32.totalorder %s29, 0
      %p195 = por %p193, %p194
      %p196 = scmp.ne.s32.totalorder %s184, %s185
      %p197 = scmp.eq.s32.totalorder %s30, 1
      %p198 = por %p196, %p197
      %p200 = scmp.ne.s32.totalorder %s185, %s199
      %p201 = scmp.eq.s32.totalorder %s30, 0
      %p202 = por %p200, %p201
      %s204 = sadd.s32 %s203, 1
      %p207 = scmp.eq.s32.totalorder %s24, 1
      %p208 = scmp.ne.s32.totalorder %s203, %s205
      %p209 = scmp.eq.s32.totalorder %s24, 0
      %p210 = por %p208, %p209
      %p211 = scmp.ne.s32.totalorder %s203, %s205
      %p212 = scmp.eq.s32.totalorder %s29, 1
      %p213 = por %p211, %p212
      %p214 = scmp.ne.s32.totalorder %s205, %s206
      %p215 = scmp.eq.s32.totalorder %s29, 0
      %p216 = por %p214, %p215
      %p217 = scmp.ne.s32.totalorder %s205, %s206
      %p218 = scmp.eq.s32.totalorder %s30, 1
      %p219 = por %p217, %p218
      %p221 = scmp.ne.s32.totalorder %s206, %s220
      %p222 = scmp.eq.s32.totalorder %s30, 0
      %p223 = por %p221, %p222
      %s225 = sadd.s32 %s224, 1
      %p228 = scmp.eq.s32.totalorder %s24, 1
      %p229 = scmp.ne.s32.totalorder %s224, %s226
      %p230 = scmp.eq.s32.totalorder %s24, 0
      %p231 = por %p229, %p230
      %p232 = scmp.ne.s32.totalorder %s224, %s226
      %p233 = scmp.eq.s32.totalorder %s29, 1
      %p234 = por %p232, %p233
      %p235 = scmp.ne.s32.totalorder %s226, %s227
      %p236 = scmp.eq.s32.totalorder %s29, 0
      %p237 = por %p235, %p236
      %p238 = scmp.ne.s32.totalorder %s226, %s227
      %p239 = scmp.eq.s32.totalorder %s30, 1
      %p240 = por %p238, %p239
      %p242 = scmp.ne.s32.totalorder %s227, %s241
      %p243 = scmp.eq.s32.totalorder %s30, 0
      %p244 = por %p242, %p243
      %s246 = sadd.s32 %s245, 1
      %p249 = scmp.eq.s32.totalorder %s24, 1
      %p250 = scmp.ne.s32.totalorder %s245, %s247
      %p251 = scmp.eq.s32.totalorder %s24, 0
      %p252 = por %p250, %p251
      %p253 = scmp.ne.s32.totalorder %s245, %s247
      %p254 = scmp.eq.s32.totalorder %s29, 1
      %p255 = por %p253, %p254
      %p256 = scmp.ne.s32.totalorder %s247, %s248
      %p257 = scmp.eq.s32.totalorder %s29, 0
      %p258 = por %p256, %p257
      %p259 = scmp.ne.s32.totalorder %s247, %s248
      %p260 = scmp.eq.s32.totalorder %s30, 1
      %p261 = por %p259, %p260
      %p263 = scmp.ne.s32.totalorder %s248, %s262
      %p264 = scmp.eq.s32.totalorder %s30, 0
      %p265 = por %p263, %p264
      %s266 = ssub.s32 %s32, %s39
      %s267 = ssub.s32 %s31, %s43
      %s268 = sor.u32 %s266, %s267
      %p269 = scmp.eq.s32.totalorder %s268, 0
      %s271 = sadd.s32 %s270, 1
      %s272 = scalar_select %p269, %s270, %s271
      %p275 = pneg %p269
      %p276 = scmp.eq.s32.totalorder %s24, 1
      %p277 = por %p275, %p276
      %p278 = scmp.ne.s32.totalorder %s270, %s273
      %p279 = scmp.eq.s32.totalorder %s24, 0
      %p280 = por %p278, %p279
      %p281 = scmp.ne.s32.totalorder %s270, %s273
      %p282 = scmp.eq.s32.totalorder %s29, 1
      %p283 = por %p281, %p282
      %p284 = scmp.ne.s32.totalorder %s273, %s274
      %p285 = scmp.eq.s32.totalorder %s29, 0
      %p286 = por %p284, %p285
      %p287 = scmp.ne.s32.totalorder %s273, %s274
      %p288 = scmp.eq.s32.totalorder %s30, 1
      %p289 = por %p287, %p288
      %p291 = scmp.ne.s32.totalorder %s274, %s290
      %p292 = scmp.eq.s32.totalorder %s30, 0
      %p293 = por %p291, %p292
      %p294 = scmp.le.s32.totalorder 1, %s24
      %p295 = scmp.lt.s32.totalorder %s24, 3
      %p296 = pnand %p294, %p295
      %p297 = pneg %p296
      // Predicated region
      $region9: #{tpu_custom_call.1} parent=5 // pred_check
        _
      $region10: #{tpu_custom_call.1} parent=5 // pred_check_branch
        %299 = sbr.rel (%p296) target = $region12
      $region11: #{tpu_custom_call.1} parent=5 // pred_region
        %s300 = ssub.s32 %s24, 1
        // Predicated region
        $region13: #{tpu_custom_call.1} parent=11 // pred_check
          %p301 = pneg %p90
        $region14: #{tpu_custom_call.1} parent=11 // pred_check_branch
          %303 = sbr.rel (%p301) target = $region16
        $region15: #{tpu_custom_call.1} parent=11 // pred_region
          %s305 = ssub.s32 128, 128
          %306 = vsyncadd [#allocation10], %s305
          %s307 = smul.addr %s33, 128
          %s308 = scalar_lea.hbm %s1, %s307
          %s310 = sshll.u32 [#allocation9], 4
          %s311 = int_to_ptr.vmem [resolvable:$true] %s310
          %313 = dma.hbm_to_vmem [thread:$0]  %s308, 128, %s311, [#allocation10]
        $region16: #{tpu_custom_call.1} parent=11 // pred_fallthru
          _
        // Predicated region
        $region17: #{tpu_custom_call.1} parent=11 // pred_check
          %p314 = pneg %p111
        $region18: #{tpu_custom_call.1} parent=11 // pred_check_branch
          %316 = sbr.rel (%p314) target = $region20
        $region19: #{tpu_custom_call.1} parent=11 // pred_region
          %s318 = ssub.s32 256, 256
          %319 = vsyncadd [#allocation10], %s318
          %s320 = sshll.u32 [#allocation11], 4
          %s321 = int_to_ptr.vmem [resolvable:$true] %s320
          %326 = dma.hbm_to_vmem [thread:$0]  %s2, 256, %s321, [#allocation10], 128, 128, 8
        $region20: #{tpu_custom_call.1} parent=11 // pred_fallthru
          _
        // Predicated region
        $region21: #{tpu_custom_call.1} parent=11 // pred_check
          %p327 = pneg %p132
        $region22: #{tpu_custom_call.1} parent=11 // pred_check_branch
          %329 = sbr.rel (%p327) target = $region24
        $region23: #{tpu_custom_call.1} parent=11 // pred_region
          _
        $region24: #{tpu_custom_call.1} parent=11 // pred_fallthru
          _
        // Predicated region
        $region25: #{tpu_custom_call.1} parent=11 // pred_check
          %p330 = pneg %p153
        $region26: #{tpu_custom_call.1} parent=11 // pred_check_branch
          %332 = sbr.rel (%p330) target = $region28
        $region27: #{tpu_custom_call.1} parent=11 // pred_region
          _
        $region28: #{tpu_custom_call.1} parent=11 // pred_fallthru
          _
        // Predicated region
        $region29: #{tpu_custom_call.1} parent=11 // pred_check
          %p333 = pneg %p174
        $region30: #{tpu_custom_call.1} parent=11 // pred_check_branch
          %335 = sbr.rel (%p333) target = $region32
        $region31: #{tpu_custom_call.1} parent=11 // pred_region
          _
        $region32: #{tpu_custom_call.1} parent=11 // pred_fallthru
          _
        // Predicated region
        $region33: #{tpu_custom_call.1} parent=11 // pred_check
          %p336 = pneg %p195
        $region34: #{tpu_custom_call.1} parent=11 // pred_check_branch
          %338 = sbr.rel (%p336) target = $region36
        $region35: #{tpu_custom_call.1} parent=11 // pred_region
          %s340 = ssub.s32 512, 512
          %341 = vsyncadd [#allocation13], %s340
          %s342 = sshll.u32 [#allocation12], 4
          %s343 = int_to_ptr.vmem [resolvable:$true] %s342
          %348 = dma.hbm_to_vmem [thread:$0]  %s6, 512, %s343, [#allocation13], 128, 128, 8
        $region36: #{tpu_custom_call.1} parent=11 // pred_fallthru
          _
        // Predicated region
        $region37: #{tpu_custom_call.1} parent=11 // pred_check
          %p349 = pneg %p216
        $region38: #{tpu_custom_call.1} parent=11 // pred_check_branch
          %351 = sbr.rel (%p349) target = $region40
        $region39: #{tpu_custom_call.1} parent=11 // pred_region
          _
        $region40: #{tpu_custom_call.1} parent=11 // pred_fallthru
          _
        // Predicated region
        $region41: #{tpu_custom_call.1} parent=11 // pred_check
          %p352 = pneg %p237
        $region42: #{tpu_custom_call.1} parent=11 // pred_check_branch
          %354 = sbr.rel (%p352) target = $region44
        $region43: #{tpu_custom_call.1} parent=11 // pred_region
          _
        $region44: #{tpu_custom_call.1} parent=11 // pred_fallthru
          _
        // Predicated region
        $region45: #{tpu_custom_call.1} parent=11 // pred_check
          %p355 = pneg %p258
        $region46: #{tpu_custom_call.1} parent=11 // pred_check_branch
          %357 = sbr.rel (%p355) target = $region48
        $region47: #{tpu_custom_call.1} parent=11 // pred_region
          _
        $region48: #{tpu_custom_call.1} parent=11 // pred_fallthru
          _
      $region12: #{tpu_custom_call.1} parent=5 // pred_fallthru
        _
      %p358 = scmp.lt.s32.totalorder %s24, 2
      // Predicated region
      $region49: #{tpu_custom_call.1} parent=5 // pred_check
        %p359 = pneg %p358
      $region50: #{tpu_custom_call.1} parent=5 // pred_check_branch
        %361 = sbr.rel (%p359) target = $region52
      $region51: #{tpu_custom_call.1} parent=5 // pred_region
        // Predicated region
        $region53: #{tpu_custom_call.1} parent=51 // pred_check
          %p362 = pneg %p58
        $region54: #{tpu_custom_call.1} parent=51 // pred_check_branch
          %364 = sbr.rel (%p362) target = $region56
        $region55: #{tpu_custom_call.1} parent=51 // pred_region
          %s365 = sand.u32 %s48, 1
          %s366 = scalar_lea.sflag [#allocation7], %s365
          %s367 = sand.u32 %s48, 1
          %s368 = smul.addr %s367, 32
          %s369 = scalar_lea.vmem [#allocation6], %s368
          %s370 = smul.u32 4, %s32
          %s372 = ssub.s32 512, 512
          %373 = vsyncadd %s366, %s372
          %s374 = sadd.s32 %s31, %s370
          %s375 = smul.addr %s374, 128
          %s376 = scalar_lea.hbm %s0, %s375
          %s377 = sshll.u32 %s369, 4
          %s378 = int_to_ptr.vmem [resolvable:$true] %s377
          %383 = dma.hbm_to_vmem [thread:$0]  %s376, 512, %s378, %s366, 128, 128, 8
        $region56: #{tpu_custom_call.1} parent=51 // pred_fallthru
          _
      $region52: #{tpu_custom_call.1} parent=5 // pred_fallthru
        _
      %p384 = scmp.le.s32.totalorder 1, %s24
      %p385 = scmp.lt.s32.totalorder %s24, 3
      %p386 = pnand %p384, %p385
      %p387 = pneg %p386
      // Predicated region
      $region57: #{tpu_custom_call.1} parent=5 // pred_check
        _
      $region58: #{tpu_custom_call.1} parent=5 // pred_check_branch
        %389 = sbr.rel (%p386) target = $region60
      $region59: #{tpu_custom_call.1} parent=5 // pred_region
        %s390 = ssub.s32 %s24, 1
        %s391 = sand.u32 %s51, 1
        %s392 = scalar_lea.sflag [#allocation7], %s391
        %s393 = sand.u32 %s51, 1
        %s394 = smul.addr %s393, 32
        %s395 = scalar_lea.vmem [#allocation6], %s394
        // Predicated region
        $region61: #{tpu_custom_call.1} parent=59 // pred_check
          %p396 = pneg %p64
        $region62: #{tpu_custom_call.1} parent=59 // pred_check_branch
          %398 = sbr.rel (%p396) target = $region64
        $region63: #{tpu_custom_call.1} parent=59 // pred_region
          %399 = dma.done %s392, 512
        $region64: #{tpu_custom_call.1} parent=59 // pred_fallthru
          _
        // Predicated region
        $region65: #{tpu_custom_call.1} parent=59 // pred_check
          %p400 = pneg %p90
        $region66: #{tpu_custom_call.1} parent=59 // pred_check_branch
          %402 = sbr.rel (%p400) target = $region68
        $region67: #{tpu_custom_call.1} parent=59 // pred_region
          %403 = dma.done [#allocation10], 128
        $region68: #{tpu_custom_call.1} parent=59 // pred_fallthru
          _
        // Predicated region
        $region69: #{tpu_custom_call.1} parent=59 // pred_check
          %p404 = pneg %p111
        $region70: #{tpu_custom_call.1} parent=59 // pred_check_branch
          %406 = sbr.rel (%p404) target = $region72
        $region71: #{tpu_custom_call.1} parent=59 // pred_region
          %407 = dma.done [#allocation10], 256
        $region72: #{tpu_custom_call.1} parent=59 // pred_fallthru
          _
        // Predicated region
        $region73: #{tpu_custom_call.1} parent=59 // pred_check
          %p408 = pneg %p195
        $region74: #{tpu_custom_call.1} parent=59 // pred_check_branch
          %410 = sbr.rel (%p408) target = $region76
        $region75: #{tpu_custom_call.1} parent=59 // pred_region
          %411 = dma.done [#allocation13], 512
        $region76: #{tpu_custom_call.1} parent=59 // pred_fallthru
          _
        %s412 = sand.u32 %s51, 1
        %s413 = scalar_lea.sflag [#allocation7], %s412
        %s414 = sand.u32 %s51, 1
        %s415 = smul.addr %s414, 32
        %s416 = scalar_lea.vmem [#allocation6], %s415
        %p417 = pneg %p64
        %p418 = pneg %p61
        %p419 = pneg %p90
        %p420 = pneg %p87
        %p421 = pneg %p111
        %p422 = pneg %p108
        %p423 = pneg %p132
        %p424 = pneg %p129
        %p425 = pneg %p153
        %p426 = pneg %p150
        %p427 = pneg %p174
        %p428 = pneg %p171
        %p429 = pneg %p195
        %p430 = pneg %p192
        %p431 = pneg %p216
        %p432 = pneg %p213
        %p433 = pneg %p237
        %p434 = pneg %p234
        %p435 = pneg %p258
        %p436 = pneg %p255
        %p437 = pneg %p286
        %p438 = pneg %p283
        %s439 = sand.u32 %s273, 1
        %s440 = scalar_lea.sflag [#allocation8], %s439
        %s441 = sand.u32 %s273, 1
        %s442 = smul.addr %s441, 32
        %s443 = scalar_lea.vmem [#allocation14], %s442
        %s444 = smul.u32 4, %s34
        %s445 = smul.u32 4, %s34
        %p446 = scmp.eq.s32.totalorder %s34, 0
        // Predicated region
        $region77: #{tpu_custom_call.1} parent=59 // pred_check
          %p447 = pneg %p446
        $region78: #{tpu_custom_call.1} parent=59 // pred_check_branch
          %449 = sbr.rel (%p447) target = $region80
        $region79: #{tpu_custom_call.1} parent=59 // pred_region
          %v450 = vld [vmem:[#allocation9] sm:$0xff]
          %vm451 = vcmask 261120
          %452 = vst.msk [vmem:[#allocation5] sm:$0xff] %vm451, %v450
        $region80: #{tpu_custom_call.1} parent=59 // pred_fallthru
          _
        %v453 = vld [vmem:[%s395] sm:$0xff]
        %v454 = vld [vmem:[%s395 + $0x8] sm:$0xff]
        %v455 = vld [vmem:[%s395 + $0x10] sm:$0xff]
        %v456 = vld [vmem:[%s395 + $0x18] sm:$0xff]
        %v457 = vld [vmem:[#allocation11] sm:$0xff]
        %v458 = vld [vmem:[#allocation11 + $0x8] sm:$0xff]
        %v459 = vld [vmem:[%s3] sm:$0x1]
        %v461 = vlaneseq
        %v462 = vshrl.u32 %v461, 7
        %v463 = vsub.s32 0, %v462
        %v464 = vrot.slane %v459, %v463
        %vm466 = vcmask 130048
        %v468 = vsel %vm466, %v453, 0
        %v471 = vsel %vm466, %v454, 0
        %v474 = vsel %vm466, %v455, 0
        %v477 = vsel %vm466, %v456, 0
        %479 = vmatprep.subr.mxu0 0.0
        %480 = vmatpush1.msra.mxu0 %v457
        %481 = vmatprep.subr.mxu0 0.0
        %482 = vmatpush1.msra.mxu0 %v458
        %483 = vmatprep.subr.mxu0 0.0
        %484 = vmatpush1.msra.mxu0 0.0
        %485 = vmatprep.subr.mxu0 0.0
        %486 = vmatpush1.msra.mxu0 0.0
        %487 = vmatprep.subr.mxu0 0.0
        %488 = vmatpush1.msra.mxu0 0.0
        %489 = vmatprep.subr.mxu0 0.0
        %490 = vmatpush1.msra.mxu0 0.0
        %491 = vmatprep.subr.mxu0 0.0
        %492 = vmatpush1.msra.mxu0 0.0
        %493 = vmatprep.subr.mxu0 0.0
        %494 = vmatpush1.msra.mxu0 0.0
        %495 = vmatprep.subr.mxu0 0.0
        %496 = vmatpush1.msra.mxu0 0.0
        %497 = vmatprep.subr.mxu0 0.0
        %498 = vmatpush1.msra.mxu0 0.0
        %499 = vmatprep.subr.mxu0 0.0
        %500 = vmatpush1.msra.mxu0 0.0
        %501 = vmatprep.subr.mxu0 0.0
        %502 = vmatpush1.msra.mxu0 0.0
        %503 = vmatprep.subr.mxu0 0.0
        %504 = vmatpush1.msra.mxu0 0.0
        %505 = vmatprep.subr.mxu0 0.0
        %506 = vmatpush1.msra.mxu0 0.0
        %507 = vmatprep.subr.mxu0 0.0
        %508 = vmatpush1.msra.mxu0 0.0
        %509 = vmatprep.subr.mxu0 0.0
        %510 = vmatpush1.msra.mxu0 0.0
        %511 = vmatprep.subr.mxu0 0.0
        %512 = vmatpush1.msra.mxu0 0.0
        %513 = vmatprep.subr.mxu0 0.0
        %514 = vmatpush1.msra.mxu0 0.0
        %515 = vmatprep.subr.mxu0 0.0
        %516 = vmatpush1.msra.mxu0 0.0
        %517 = vmatprep.subr.mxu0 0.0
        %518 = vmatpush1.msra.mxu0 0.0
        %519 = vmatprep.subr.mxu0 0.0
        %520 = vmatpush1.msra.mxu0 0.0
        %521 = vmatprep.subr.mxu0 0.0
        %522 = vmatpush1.msra.mxu0 0.0
        %523 = vmatprep.subr.mxu0 0.0
        %524 = vmatpush1.msra.mxu0 0.0
        %525 = vmatprep.subr.mxu0 0.0
        %526 = vmatpush1.msra.mxu0 0.0
        %527 = vmatprep.subr.mxu0 0.0
        %528 = vmatpush1.msra.mxu0 0.0
        %529 = vmatprep.subr.mxu0 0.0
        %530 = vmatpush1.msra.mxu0 0.0
        %531 = vmatprep.subr.mxu0 0.0
        %532 = vmatpush1.msra.mxu0 0.0
        %533 = vmatprep.subr.mxu0 0.0
        %534 = vmatpush1.msra.mxu0 0.0
        %535 = vmatprep.subr.mxu0 0.0
        %536 = vmatpush1.msra.mxu0 0.0
        %537 = vmatprep.subr.mxu0 0.0
        %538 = vmatpush1.msra.mxu0 0.0
        %539 = vmatprep.subr.mxu0 0.0
        %540 = vmatpush1.msra.mxu0 0.0
        %541 = vmatprep.subr.mxu0 0.0
        %542 = vmatpush1.msra.mxu0 0.0
        %543 = vmatprep.mubr.f32.mxu0 0.0
        %544 = vmatmul.mubr.f32.gmra.mrb[0].mxu0 %v468
        %v545 = vpop.f32.mrb[0].mxu0
        %v546 = vadd.f32 %v464, %v545
        %v547 = vpop.f32.mrb[0].mxu0
        %548 = vmatprep.mubr.f32.mxu0 0.0
        %549 = vmatmul.mubr.f32.gmra.mrb[0].mxu0 %v471
        %v550 = vpop.f32.mrb[0].mxu0
        %v551 = vadd.f32 %v464, %v550
        %v552 = vpop.f32.mrb[0].mxu0
        %553 = vmatprep.mubr.f32.mxu0 0.0
        %554 = vmatmul.mubr.f32.gmra.mrb[0].mxu0 %v474
        %v555 = vpop.f32.mrb[0].mxu0
        %v556 = vadd.f32 %v464, %v555
        %v557 = vpop.f32.mrb[0].mxu0
        %558 = vmatprep.mubr.f32.mxu0 0.0
        %559 = vmatmul.mubr.f32.gmra.mrb[0].mxu0 %v477
        %v560 = vpop.f32.mrb[0].mxu0
        %v561 = vadd.f32 %v464, %v560
        %v562 = vpop.f32.mrb[0].mxu0
        %563 = vdwg.mxu0
        %v564 = vld [vmem:[%s4] sm:$0x1]
        %v565 = vld [vmem:[%s5] sm:$0x1]
        %vm566 = vcmask 785408
        %v567 = vsel %vm566, %v546, 0.0
        %568 = vadd.xlane.f32.xlu0 %v567
        %v569 = vpop.xlane.xlu0 %568
        %v570 = vsel %vm566, %v551, 0.0
        %571 = vadd.xlane.f32.xlu0 %v570
        %v572 = vpop.xlane.xlu0 %571
        %v573 = vsel %vm566, %v556, 0.0
        %574 = vadd.xlane.f32.xlu0 %v573
        %v575 = vpop.xlane.xlu0 %574
        %v576 = vsel %vm566, %v561, 0.0
        %577 = vadd.xlane.f32.xlu0 %v576
        %v578 = vpop.xlane.xlu0 %577
        %v579 = vrcp.pop 96.0
        %v580 = vmul.f32 %v569, %v579
        %v581 = vmul.f32 %v572, %v579
        %v582 = vmul.f32 %v575, %v579
        %v583 = vmul.f32 %v578, %v579
        %v584 = vsub.f32 %v546, %v580
        %v585 = vsub.f32 %v551, %v581
        %v586 = vsub.f32 %v556, %v582
        %v587 = vsub.f32 %v561, %v583
        %v588 = vmul.f32 %v584, %v584
        %v589 = vmul.f32 %v585, %v585
        %v590 = vmul.f32 %v586, %v586
        %v591 = vmul.f32 %v587, %v587
        %v592 = vsel %vm566, %v588, 0.0
        %593 = vadd.xlane.f32.xlu0 %v592
        %v594 = vpop.xlane.xlu0 %593
        %v595 = vsel %vm566, %v589, 0.0
        %596 = vadd.xlane.f32.xlu0 %v595
        %v597 = vpop.xlane.xlu0 %596
        %v598 = vsel %vm566, %v590, 0.0
        %599 = vadd.xlane.f32.xlu0 %v598
        %v600 = vpop.xlane.xlu0 %599
        %v601 = vsel %vm566, %v591, 0.0
        %602 = vadd.xlane.f32.xlu0 %v601
        %v603 = vpop.xlane.xlu0 %602
        %v604 = vmul.f32 %v594, %v579
        %v605 = vmul.f32 %v597, %v579
        %v606 = vmul.f32 %v600, %v579
        %v607 = vmul.f32 %v603, %v579
        %v608 = vadd.f32 %v604, 1e-05
        %v609 = vadd.f32 %v605, 1e-05
        %v610 = vadd.f32 %v606, 1e-05
        %v611 = vadd.f32 %v607, 1e-05
        %v612 = vrsqrt.pop %v608
        %v613 = vrsqrt.pop %v609
        %v614 = vrsqrt.pop %v610
        %v615 = vrsqrt.pop %v611
        %v616 = vmul.f32 %v584, %v612
        %v617 = vmul.f32 %v585, %v613
        %v618 = vmul.f32 %v586, %v614
        %v619 = vmul.f32 %v587, %v615
        %v621 = vlaneseq
        %v622 = vshrl.u32 %v621, 7
        %v623 = vsub.s32 0, %v622
        %v624 = vrot.slane %v564, %v623
        %v626 = vmul.f32 %v616, %v624
        %v627 = vmul.f32 %v617, %v624
        %v628 = vmul.f32 %v618, %v624
        %v629 = vmul.f32 %v619, %v624
        %v631 = vlaneseq
        %v632 = vshrl.u32 %v631, 7
        %v633 = vsub.s32 0, %v632
        %v634 = vrot.slane %v565, %v633
        %v636 = vadd.f32 %v626, %v634
        %v637 = vadd.f32 %v627, %v634
        %v638 = vadd.f32 %v628, %v634
        %v639 = vadd.f32 %v629, %v634
        %vm640 = vcmask 261120
        %641 = vst.msk [vmem:[#allocation2] sm:$0xff] %vm640, %v636
        %642 = vst.msk [vmem:[#allocation2 + $0x8] sm:$0xff] %vm640, %v637
        %643 = vst.msk [vmem:[#allocation2 + $0x10] sm:$0xff] %vm640, %v638
        %644 = vst.msk [vmem:[#allocation2 + $0x18] sm:$0xff] %vm640, %v639
        %649 = vrot.lane.b32.xlu0 %v636, 96
        %v650 = vpop.permute.xlu0 %649
        %651 = vrot.lane.b32.xlu0 %v637, 96
        %v652 = vpop.permute.xlu0 %651
        %653 = vrot.lane.b32.xlu0 %v638, 96
        %v654 = vpop.permute.xlu0 %653
        %655 = vrot.lane.b32.xlu0 %v639, 96
        %v656 = vpop.permute.xlu0 %655
        %661 = vst.msk [vmem:[#allocation3] sm:$0xff] %vm640, %v650
        %662 = vst.msk [vmem:[#allocation3 + $0x8] sm:$0xff] %vm640, %v652
        %663 = vst.msk [vmem:[#allocation3 + $0x10] sm:$0xff] %vm640, %v654
        %664 = vst.msk [vmem:[#allocation3 + $0x18] sm:$0xff] %vm640, %v656
        %665 = vrot.lane.b32.xlu0 %v636, 64
        %v666 = vpop.permute.xlu0 %665
        %667 = vrot.lane.b32.xlu0 %v637, 64
        %v668 = vpop.permute.xlu0 %667
        %669 = vrot.lane.b32.xlu0 %v638, 64
        %v670 = vpop.permute.xlu0 %669
        %671 = vrot.lane.b32.xlu0 %v639, 64
        %v672 = vpop.permute.xlu0 %671
        %677 = vst.msk [vmem:[#allocation4] sm:$0xff] %vm640, %v666
        %678 = vst.msk [vmem:[#allocation4 + $0x8] sm:$0xff] %vm640, %v668
        %679 = vst.msk [vmem:[#allocation4 + $0x10] sm:$0xff] %vm640, %v670
        %680 = vst.msk [vmem:[#allocation4 + $0x18] sm:$0xff] %vm640, %v672
        %v681 = vld [vmem:[#allocation12] sm:$0xff]
        %v682 = vld [vmem:[#allocation12 + $0x8] sm:$0xff]
        %v683 = vld [vmem:[#allocation12 + $0x10] sm:$0xff]
        %v684 = vld [vmem:[#allocation12 + $0x18] sm:$0xff]
        %v685 = vld [vmem:[%s7] sm:$0x1]
        %v687 = vlaneseq
        %v688 = vshrl.u32 %v687, 7
        %v689 = vsub.s32 0, %v688
        %v690 = vrot.slane %v685, %v689
        %v692 = vld [vmem:[%s8] sm:$0x1]
        %v694 = vlaneseq
        %v695 = vshrl.u32 %v694, 7
        %v696 = vsub.s32 0, %v695
        %v697 = vrot.slane %v692, %v696
        %v699 = vld [vmem:[%s9] sm:$0x1]
        %v701 = vlaneseq
        %v702 = vshrl.u32 %v701, 7
        %v703 = vsub.s32 0, %v702
        %v704 = vrot.slane %v699, %v703
        %v706 = vld [vmem:[#allocation5] sm:$0xff]
        %v708 = vsel %vm640, %v706, 0
        %710 = vmatprep.subr.mxu0 0.0
        %711 = vmatpush1.msra.mxu0 %v681
        %712 = vmatprep.subr.mxu0 0.0
        %713 = vmatpush1.msra.mxu0 %v682
        %714 = vmatprep.subr.mxu0 0.0
        %715 = vmatpush1.msra.mxu0 %v683
        %716 = vmatprep.subr.mxu0 0.0
        %717 = vmatpush1.msra.mxu0 %v684
        %718 = vmatprep.subr.mxu0 0.0
        %719 = vmatpush1.msra.mxu0 0.0
        %720 = vmatprep.subr.mxu0 0.0
        %721 = vmatpush1.msra.mxu0 0.0
        %722 = vmatprep.subr.mxu0 0.0
        %723 = vmatpush1.msra.mxu0 0.0
        %724 = vmatprep.subr.mxu0 0.0
        %725 = vmatpush1.msra.mxu0 0.0
        %726 = vmatprep.subr.mxu0 0.0
        %727 = vmatpush1.msra.mxu0 0.0
        %728 = vmatprep.subr.mxu0 0.0
        %729 = vmatpush1.msra.mxu0 0.0
        %730 = vmatprep.subr.mxu0 0.0
        %731 = vmatpush1.msra.mxu0 0.0
        %732 = vmatprep.subr.mxu0 0.0
        %733 = vmatpush1.msra.mxu0 0.0
        %734 = vmatprep.subr.mxu0 0.0
        %735 = vmatpush1.msra.mxu0 0.0
        %736 = vmatprep.subr.mxu0 0.0
        %737 = vmatpush1.msra.mxu0 0.0
        %738 = vmatprep.subr.mxu0 0.0
        %739 = vmatpush1.msra.mxu0 0.0
        %740 = vmatprep.subr.mxu0 0.0
        %741 = vmatpush1.msra.mxu0 0.0
        %742 = vmatprep.subr.mxu0 0.0
        %743 = vmatpush1.msra.mxu0 0.0
        %744 = vmatprep.subr.mxu0 0.0
        %745 = vmatpush1.msra.mxu0 0.0
        %746 = vmatprep.subr.mxu0 0.0
        %747 = vmatpush1.msra.mxu0 0.0
        %748 = vmatprep.subr.mxu0 0.0
        %749 = vmatpush1.msra.mxu0 0.0
        %750 = vmatprep.subr.mxu0 0.0
        %751 = vmatpush1.msra.mxu0 0.0
        %752 = vmatprep.subr.mxu0 0.0
        %753 = vmatpush1.msra.mxu0 0.0
        %754 = vmatprep.subr.mxu0 0.0
        %755 = vmatpush1.msra.mxu0 0.0
        %756 = vmatprep.subr.mxu0 0.0
        %757 = vmatpush1.msra.mxu0 0.0
        %758 = vmatprep.subr.mxu0 0.0
        %759 = vmatpush1.msra.mxu0 0.0
        %760 = vmatprep.subr.mxu0 0.0
        %761 = vmatpush1.msra.mxu0 0.0
        %762 = vmatprep.subr.mxu0 0.0
        %763 = vmatpush1.msra.mxu0 0.0
        %764 = vmatprep.subr.mxu0 0.0
        %765 = vmatpush1.msra.mxu0 0.0
        %766 = vmatprep.subr.mxu0 0.0
        %767 = vmatpush1.msra.mxu0 0.0
        %768 = vmatprep.subr.mxu0 0.0
        %769 = vmatpush1.msra.mxu0 0.0
        %770 = vmatprep.subr.mxu0 0.0
        %771 = vmatpush1.msra.mxu0 0.0
        %772 = vmatprep.subr.mxu0 0.0
        %773 = vmatpush1.msra.mxu0 0.0
        %774 = vmatprep.mubr.f32.mxu0 0.0
        %775 = vmatmul.mubr.f32.gmra.mrb[0].mxu0 %v708
        %v776 = vpop.f32.mrb[0].mxu0
        %v777 = vadd.f32 %v690, %v776
        %v778 = vpop.f32.mrb[0].mxu0
        %779 = vdwg.mxu0
        %784 = vrot.lane.b32.xlu0 %v681, 96
        %v785 = vpop.permute.xlu0 %784
        %786 = vrot.lane.b32.xlu0 %v682, 96
        %v787 = vpop.permute.xlu0 %786
        %788 = vrot.lane.b32.xlu0 %v683, 96
        %v789 = vpop.permute.xlu0 %788
        %790 = vrot.lane.b32.xlu0 %v684, 96
        %v791 = vpop.permute.xlu0 %790
        %796 = vrot.lane.b32.xlu0 %v690, 96
        %v797 = vpop.permute.xlu0 %796
        %799 = vmatprep.subr.mxu0 0.0
        %800 = vmatpush1.msra.mxu0 %v785
        %801 = vmatprep.subr.mxu0 0.0
        %802 = vmatpush1.msra.mxu0 %v787
        %803 = vmatprep.subr.mxu0 0.0
        %804 = vmatpush1.msra.mxu0 %v789
        %805 = vmatprep.subr.mxu0 0.0
        %806 = vmatpush1.msra.mxu0 %v791
        %807 = vmatprep.subr.mxu0 0.0
        %808 = vmatpush1.msra.mxu0 0.0
        %809 = vmatprep.subr.mxu0 0.0
        %810 = vmatpush1.msra.mxu0 0.0
        %811 = vmatprep.subr.mxu0 0.0
        %812 = vmatpush1.msra.mxu0 0.0
        %813 = vmatprep.subr.mxu0 0.0
        %814 = vmatpush1.msra.mxu0 0.0
        %815 = vmatprep.subr.mxu0 0.0
        %816 = vmatpush1.msra.mxu0 0.0
        %817 = vmatprep.subr.mxu0 0.0
        %818 = vmatpush1.msra.mxu0 0.0
        %819 = vmatprep.subr.mxu0 0.0
        %820 = vmatpush1.msra.mxu0 0.0
        %821 = vmatprep.subr.mxu0 0.0
        %822 = vmatpush1.msra.mxu0 0.0
        %823 = vmatprep.subr.mxu0 0.0
        %824 = vmatpush1.msra.mxu0 0.0
        %825 = vmatprep.subr.mxu0 0.0
        %826 = vmatpush1.msra.mxu0 0.0
        %827 = vmatprep.subr.mxu0 0.0
        %828 = vmatpush1.msra.mxu0 0.0
        %829 = vmatprep.subr.mxu0 0.0
        %830 = vmatpush1.msra.mxu0 0.0
        %831 = vmatprep.subr.mxu0 0.0
        %832 = vmatpush1.msra.mxu0 0.0
        %833 = vmatprep.subr.mxu0 0.0
        %834 = vmatpush1.msra.mxu0 0.0
        %835 = vmatprep.subr.mxu0 0.0
        %836 = vmatpush1.msra.mxu0 0.0
        %837 = vmatprep.subr.mxu0 0.0
        %838 = vmatpush1.msra.mxu0 0.0
        %839 = vmatprep.subr.mxu0 0.0
        %840 = vmatpush1.msra.mxu0 0.0
        %841 = vmatprep.subr.mxu0 0.0
        %842 = vmatpush1.msra.mxu0 0.0
        %843 = vmatprep.subr.mxu0 0.0
        %844 = vmatpush1.msra.mxu0 0.0
        %845 = vmatprep.subr.mxu0 0.0
        %846 = vmatpush1.msra.mxu0 0.0
        %847 = vmatprep.subr.mxu0 0.0
        %848 = vmatpush1.msra.mxu0 0.0
        %849 = vmatprep.subr.mxu0 0.0
        %850 = vmatpush1.msra.mxu0 0.0
        %851 = vmatprep.subr.mxu0 0.0
        %852 = vmatpush1.msra.mxu0 0.0
        %853 = vmatprep.subr.mxu0 0.0
        %854 = vmatpush1.msra.mxu0 0.0
        %855 = vmatprep.subr.mxu0 0.0
        %856 = vmatpush1.msra.mxu0 0.0
        %857 = vmatprep.subr.mxu0 0.0
        %858 = vmatpush1.msra.mxu0 0.0
        %859 = vmatprep.subr.mxu0 0.0
        %860 = vmatpush1.msra.mxu0 0.0
        %861 = vmatprep.subr.mxu0 0.0
        %862 = vmatpush1.msra.mxu0 0.0
        %863 = vmatprep.mubr.f32.mxu0 0.0
        %864 = vmatmul.mubr.f32.gmra.mrb[0].mxu0 %v708
        %v865 = vpop.f32.mrb[0].mxu0
        %v866 = vadd.f32 %v797, %v865
        %v867 = vpop.f32.mrb[0].mxu0
        %868 = vdwg.mxu0
        %869 = vrot.lane.b32.xlu0 %v681, 64
        %v870 = vpop.permute.xlu0 %869
        %871 = vrot.lane.b32.xlu0 %v682, 64
        %v872 = vpop.permute.xlu0 %871
        %873 = vrot.lane.b32.xlu0 %v683, 64
        %v874 = vpop.permute.xlu0 %873
        %875 = vrot.lane.b32.xlu0 %v684, 64
        %v876 = vpop.permute.xlu0 %875
        %881 = vrot.lane.b32.xlu0 %v690, 64
        %v882 = vpop.permute.xlu0 %881
        %884 = vmatprep.subr.mxu0 0.0
        %885 = vmatpush1.msra.mxu0 %v870
        %886 = vmatprep.subr.mxu0 0.0
        %887 = vmatpush1.msra.mxu0 %v872
        %888 = vmatprep.subr.mxu0 0.0
        %889 = vmatpush1.msra.mxu0 %v874
        %890 = vmatprep.subr.mxu0 0.0
        %891 = vmatpush1.msra.mxu0 %v876
        %892 = vmatprep.subr.mxu0 0.0
        %893 = vmatpush1.msra.mxu0 0.0
        %894 = vmatprep.subr.mxu0 0.0
        %895 = vmatpush1.msra.mxu0 0.0
        %896 = vmatprep.subr.mxu0 0.0
        %897 = vmatpush1.msra.mxu0 0.0
        %898 = vmatprep.subr.mxu0 0.0
        %899 = vmatpush1.msra.mxu0 0.0
        %900 = vmatprep.subr.mxu0 0.0
        %901 = vmatpush1.msra.mxu0 0.0
        %902 = vmatprep.subr.mxu0 0.0
        %903 = vmatpush1.msra.mxu0 0.0
        %904 = vmatprep.subr.mxu0 0.0
        %905 = vmatpush1.msra.mxu0 0.0
        %906 = vmatprep.subr.mxu0 0.0
        %907 = vmatpush1.msra.mxu0 0.0
        %908 = vmatprep.subr.mxu0 0.0
        %909 = vmatpush1.msra.mxu0 0.0
        %910 = vmatprep.subr.mxu0 0.0
        %911 = vmatpush1.msra.mxu0 0.0
        %912 = vmatprep.subr.mxu0 0.0
        %913 = vmatpush1.msra.mxu0 0.0
        %914 = vmatprep.subr.mxu0 0.0
        %915 = vmatpush1.msra.mxu0 0.0
        %916 = vmatprep.subr.mxu0 0.0
        %917 = vmatpush1.msra.mxu0 0.0
        %918 = vmatprep.subr.mxu0 0.0
        %919 = vmatpush1.msra.mxu0 0.0
        %920 = vmatprep.subr.mxu0 0.0
        %921 = vmatpush1.msra.mxu0 0.0
        %922 = vmatprep.subr.mxu0 0.0
        %923 = vmatpush1.msra.mxu0 0.0
        %924 = vmatprep.subr.mxu0 0.0
        %925 = vmatpush1.msra.mxu0 0.0
        %926 = vmatprep.subr.mxu0 0.0
        %927 = vmatpush1.msra.mxu0 0.0
        %928 = vmatprep.subr.mxu0 0.0
        %929 = vmatpush1.msra.mxu0 0.0
        %930 = vmatprep.subr.mxu0 0.0
        %931 = vmatpush1.msra.mxu0 0.0
        %932 = vmatprep.subr.mxu0 0.0
        %933 = vmatpush1.msra.mxu0 0.0
        %934 = vmatprep.subr.mxu0 0.0
        %935 = vmatpush1.msra.mxu0 0.0
        %936 = vmatprep.subr.mxu0 0.0
        %937 = vmatpush1.msra.mxu0 0.0
        %938 = vmatprep.subr.mxu0 0.0
        %939 = vmatpush1.msra.mxu0 0.0
        %940 = vmatprep.subr.mxu0 0.0
        %941 = vmatpush1.msra.mxu0 0.0
        %942 = vmatprep.subr.mxu0 0.0
        %943 = vmatpush1.msra.mxu0 0.0
        %944 = vmatprep.subr.mxu0 0.0
        %945 = vmatpush1.msra.mxu0 0.0
        %946 = vmatprep.subr.mxu0 0.0
        %947 = vmatpush1.msra.mxu0 0.0
        %948 = vmatprep.mubr.f32.mxu0 0.0
        %949 = vmatmul.mubr.f32.gmra.mrb[0].mxu0 %v708
        %v950 = vpop.f32.mrb[0].mxu0
        %v951 = vadd.f32 %v882, %v950
        %v952 = vpop.f32.mrb[0].mxu0
        %953 = vdwg.mxu0
        %v954 = vsel %vm640, %v777, 0.0
        %955 = vadd.xlane.f32.xlu0 %v954
        %v956 = vpop.xlane.xlu0 %955
        %v957 = vsel %vm640, %v866, 0.0
        %958 = vadd.xlane.f32.xlu0 %v957
        %v959 = vpop.xlane.xlu0 %958
        %v960 = vadd.f32 %v956, %v959
        %v961 = vsel %vm640, %v951, 0.0
        %962 = vadd.xlane.f32.xlu0 %v961
        %v963 = vpop.xlane.xlu0 %962
        %v964 = vadd.f32 %v960, %v963
        %v965 = vmul.f32 %v777, %v777
        %v966 = vsel %vm640, %v965, 0.0
        %967 = vadd.xlane.f32.xlu0 %v966
        %v968 = vpop.xlane.xlu0 %967
        %v969 = vmul.f32 %v866, %v866
        %v970 = vsel %vm640, %v969, 0.0
        %971 = vadd.xlane.f32.xlu0 %v970
        %v972 = vpop.xlane.xlu0 %971
        %v973 = vadd.f32 %v968, %v972
        %v974 = vmul.f32 %v951, %v951
        %v975 = vsel %vm640, %v974, 0.0
        %976 = vadd.xlane.f32.xlu0 %v975
        %v977 = vpop.xlane.xlu0 %976
        %v978 = vadd.f32 %v973, %v977
        %v979 = vmul.f32 %v964, 0.010416667
        %v980 = vmul.f32 %v978, 0.010416667
        %v981 = vmul.f32 %v979, %v979
        %v982 = vsub.f32 %v980, %v981
        %v983 = vadd.f32 %v982, 1e-05
        %v984 = vrsqrt.pop %v983
        %v985 = vsub.f32 %v777, %v979
        %v986 = vmul.f32 %v985, %v984
        %v987 = vmul.f32 %v986, %v697
        %v988 = vadd.f32 %v987, %v704
        %v989 = vsub.f32 %v866, %v979
        %v990 = vmul.f32 %v989, %v984
        %991 = vrot.lane.b32.xlu0 %v697, 96
        %v992 = vpop.permute.xlu0 %991
        %v994 = vmul.f32 %v990, %v992
        %995 = vrot.lane.b32.xlu0 %v704, 96
        %v996 = vpop.permute.xlu0 %995
        %v998 = vadd.f32 %v994, %v996
        %v999 = vsub.f32 %v951, %v979
        %v1000 = vmul.f32 %v999, %v984
        %1001 = vrot.lane.b32.xlu0 %v697, 64
        %v1002 = vpop.permute.xlu0 %1001
        %v1004 = vmul.f32 %v1000, %v1002
        %1005 = vrot.lane.b32.xlu0 %v704, 64
        %v1006 = vpop.permute.xlu0 %1005
        %v1008 = vadd.f32 %v1004, %v1006
        %v1009 = vld [vmem:[#allocation2] sm:$0xff]
        %v1010 = vadd.f32 %v1009, %v988
        %v1011 = vxor.u32 %v1010, 2147483648
        %v1012 = vmul.f32 %v1011, 1.442695
        %v1013 = vpow.pop %v1012
        %v1014 = vadd.f32 %v1013, 1.0
        %v1015 = vrcp.pop %v1014
        %v1016 = vmul.f32 1.0, %v1015
        %v1017 = vld [vmem:[#allocation3] sm:$0xff]
        %v1018 = vadd.f32 %v1017, %v998
        %v1019 = vxor.u32 %v1018, 2147483648
        %v1020 = vmul.f32 %v1019, 1.442695
        %v1021 = vpow.pop %v1020
        %v1022 = vadd.f32 %v1021, 1.0
        %v1023 = vrcp.pop %v1022
        %v1024 = vmul.f32 1.0, %v1023
        %v1025 = vld [vmem:[#allocation4] sm:$0xff]
        %v1026 = vmul.f32 %v1016, %v1008
        %v1027 = vadd.f32 %v1025, %v1026
        %v1028 = vtanh.pop %v1027
        %v1029 = vsub.f32 %v706, %v1028
        %v1030 = vmul.f32 %v1024, %v1029
        %v1031 = vadd.f32 %v1028, %v1030
        %1032 = vst.msk [vmem:[%s443] sm:$0xff] %vm640, %v1031
        %v1034 = vsel %vm640, %v1031, 0
        %1036 = vmatprep.subr.mxu0 0.0
        %1037 = vmatpush1.msra.mxu0 %v681
        %1038 = vmatprep.subr.mxu0 0.0
        %1039 = vmatpush1.msra.mxu0 %v682
        %1040 = vmatprep.subr.mxu0 0.0
        %1041 = vmatpush1.msra.mxu0 %v683
        %1042 = vmatprep.subr.mxu0 0.0
        %1043 = vmatpush1.msra.mxu0 %v684
        %1044 = vmatprep.subr.mxu0 0.0
        %1045 = vmatpush1.msra.mxu0 0.0
        %1046 = vmatprep.subr.mxu0 0.0
        %1047 = vmatpush1.msra.mxu0 0.0
        %1048 = vmatprep.subr.mxu0 0.0
        %1049 = vmatpush1.msra.mxu0 0.0
        %1050 = vmatprep.subr.mxu0 0.0
        %1051 = vmatpush1.msra.mxu0 0.0
        %1052 = vmatprep.subr.mxu0 0.0
        %1053 = vmatpush1.msra.mxu0 0.0
        %1054 = vmatprep.subr.mxu0 0.0
        %1055 = vmatpush1.msra.mxu0 0.0
        %1056 = vmatprep.subr.mxu0 0.0
        %1057 = vmatpush1.msra.mxu0 0.0
        %1058 = vmatprep.subr.mxu0 0.0
        %1059 = vmatpush1.msra.mxu0 0.0
        %1060 = vmatprep.subr.mxu0 0.0
        %1061 = vmatpush1.msra.mxu0 0.0
        %1062 = vmatprep.subr.mxu0 0.0
        %1063 = vmatpush1.msra.mxu0 0.0
        %1064 = vmatprep.subr.mxu0 0.0
        %1065 = vmatpush1.msra.mxu0 0.0
        %1066 = vmatprep.subr.mxu0 0.0
        %1067 = vmatpush1.msra.mxu0 0.0
        %1068 = vmatprep.subr.mxu0 0.0
        %1069 = vmatpush1.msra.mxu0 0.0
        %1070 = vmatprep.subr.mxu0 0.0
        %1071 = vmatpush1.msra.mxu0 0.0
        %1072 = vmatprep.subr.mxu0 0.0
        %1073 = vmatpush1.msra.mxu0 0.0
        %1074 = vmatprep.subr.mxu0 0.0
        %1075 = vmatpush1.msra.mxu0 0.0
        %1076 = vmatprep.subr.mxu0 0.0
        %1077 = vmatpush1.msra.mxu0 0.0
        %1078 = vmatprep.subr.mxu0 0.0
        %1079 = vmatpush1.msra.mxu0 0.0
        %1080 = vmatprep.subr.mxu0 0.0
        %1081 = vmatpush1.msra.mxu0 0.0
        %1082 = vmatprep.subr.mxu0 0.0
        %1083 = vmatpush1.msra.mxu0 0.0
        %1084 = vmatprep.subr.mxu0 0.0
        %1085 = vmatpush1.msra.mxu0 0.0
        %1086 = vmatprep.subr.mxu0 0.0
        %1087 = vmatpush1.msra.mxu0 0.0
        %1088 = vmatprep.subr.mxu0 0.0
        %1089 = vmatpush1.msra.mxu0 0.0
        %1090 = vmatprep.subr.mxu0 0.0
        %1091 = vmatpush1.msra.mxu0 0.0
        %1092 = vmatprep.subr.mxu0 0.0
        %1093 = vmatpush1.msra.mxu0 0.0
        %1094 = vmatprep.subr.mxu0 0.0
        %1095 = vmatpush1.msra.mxu0 0.0
        %1096 = vmatprep.subr.mxu0 0.0
        %1097 = vmatpush1.msra.mxu0 0.0
        %1098 = vmatprep.subr.mxu0 0.0
        %1099 = vmatpush1.msra.mxu0 0.0
        %1100 = vmatprep.mubr.f32.mxu0 0.0
        %1101 = vmatmul.mubr.f32.gmra.mrb[0].mxu0 %v1034
        %v1102 = vpop.f32.mrb[0].mxu0
        %v1103 = vadd.f32 %v690, %v1102
        %v1104 = vpop.f32.mrb[0].mxu0
        %1105 = vdwg.mxu0
        %1106 = vmatprep.subr.mxu0 0.0
        %1107 = vmatpush1.msra.mxu0 %v785
        %1108 = vmatprep.subr.mxu0 0.0
        %1109 = vmatpush1.msra.mxu0 %v787
        %1110 = vmatprep.subr.mxu0 0.0
        %1111 = vmatpush1.msra.mxu0 %v789
        %1112 = vmatprep.subr.mxu0 0.0
        %1113 = vmatpush1.msra.mxu0 %v791
        %1114 = vmatprep.subr.mxu0 0.0
        %1115 = vmatpush1.msra.mxu0 0.0
        %1116 = vmatprep.subr.mxu0 0.0
        %1117 = vmatpush1.msra.mxu0 0.0
        %1118 = vmatprep.subr.mxu0 0.0
        %1119 = vmatpush1.msra.mxu0 0.0
        %1120 = vmatprep.subr.mxu0 0.0
        %1121 = vmatpush1.msra.mxu0 0.0
        %1122 = vmatprep.subr.mxu0 0.0
        %1123 = vmatpush1.msra.mxu0 0.0
        %1124 = vmatprep.subr.mxu0 0.0
        %1125 = vmatpush1.msra.mxu0 0.0
        %1126 = vmatprep.subr.mxu0 0.0
        %1127 = vmatpush1.msra.mxu0 0.0
        %1128 = vmatprep.subr.mxu0 0.0
        %1129 = vmatpush1.msra.mxu0 0.0
        %1130 = vmatprep.subr.mxu0 0.0
        %1131 = vmatpush1.msra.mxu0 0.0
        %1132 = vmatprep.subr.mxu0 0.0
        %1133 = vmatpush1.msra.mxu0 0.0
        %1134 = vmatprep.subr.mxu0 0.0
        %1135 = vmatpush1.msra.mxu0 0.0
        %1136 = vmatprep.subr.mxu0 0.0
        %1137 = vmatpush1.msra.mxu0 0.0
        %1138 = vmatprep.subr.mxu0 0.0
        %1139 = vmatpush1.msra.mxu0 0.0
        %1140 = vmatprep.subr.mxu0 0.0
        %1141 = vmatpush1.msra.mxu0 0.0
        %1142 = vmatprep.subr.mxu0 0.0
        %1143 = vmatpush1.msra.mxu0 0.0
        %1144 = vmatprep.subr.mxu0 0.0
        %1145 = vmatpush1.msra.mxu0 0.0
        %1146 = vmatprep.subr.mxu0 0.0
        %1147 = vmatpush1.msra.mxu0 0.0
        %1148 = vmatprep.subr.mxu0 0.0
        %1149 = vmatpush1.msra.mxu0 0.0
        %1150 = vmatprep.subr.mxu0 0.0
        %1151 = vmatpush1.msra.mxu0 0.0
        %1152 = vmatprep.subr.mxu0 0.0
        %1153 = vmatpush1.msra.mxu0 0.0
        %1154 = vmatprep.subr.mxu0 0.0
        %1155 = vmatpush1.msra.mxu0 0.0
        %1156 = vmatprep.subr.mxu0 0.0
        %1157 = vmatpush1.msra.mxu0 0.0
        %1158 = vmatprep.subr.mxu0 0.0
        %1159 = vmatpush1.msra.mxu0 0.0
        %1160 = vmatprep.subr.mxu0 0.0
        %1161 = vmatpush1.msra.mxu0 0.0
        %1162 = vmatprep.subr.mxu0 0.0
        %1163 = vmatpush1.msra.mxu0 0.0
        %1164 = vmatprep.subr.mxu0 0.0
        %1165 = vmatpush1.msra.mxu0 0.0
        %1166 = vmatprep.subr.mxu0 0.0
        %1167 = vmatpush1.msra.mxu0 0.0
        %1168 = vmatprep.subr.mxu0 0.0
        %1169 = vmatpush1.msra.mxu0 0.0
        %1170 = vmatprep.mubr.f32.mxu0 0.0
        %1171 = vmatmul.mubr.f32.gmra.mrb[0].mxu0 %v1034
        %v1172 = vpop.f32.mrb[0].mxu0
        %v1173 = vadd.f32 %v797, %v1172
        %v1174 = vpop.f32.mrb[0].mxu0
        %1175 = vdwg.mxu0
        %1176 = vmatprep.subr.mxu0 0.0
        %1177 = vmatpush1.msra.mxu0 %v870
        %1178 = vmatprep.subr.mxu0 0.0
        %1179 = vmatpush1.msra.mxu0 %v872
        %1180 = vmatprep.subr.mxu0 0.0
        %1181 = vmatpush1.msra.mxu0 %v874
        %1182 = vmatprep.subr.mxu0 0.0
        %1183 = vmatpush1.msra.mxu0 %v876
        %1184 = vmatprep.subr.mxu0 0.0
        %1185 = vmatpush1.msra.mxu0 0.0
        %1186 = vmatprep.subr.mxu0 0.0
        %1187 = vmatpush1.msra.mxu0 0.0
        %1188 = vmatprep.subr.mxu0 0.0
        %1189 = vmatpush1.msra.mxu0 0.0
        %1190 = vmatprep.subr.mxu0 0.0
        %1191 = vmatpush1.msra.mxu0 0.0
        %1192 = vmatprep.subr.mxu0 0.0
        %1193 = vmatpush1.msra.mxu0 0.0
        %1194 = vmatprep.subr.mxu0 0.0
        %1195 = vmatpush1.msra.mxu0 0.0
        %1196 = vmatprep.subr.mxu0 0.0
        %1197 = vmatpush1.msra.mxu0 0.0
        %1198 = vmatprep.subr.mxu0 0.0
        %1199 = vmatpush1.msra.mxu0 0.0
        %1200 = vmatprep.subr.mxu0 0.0
        %1201 = vmatpush1.msra.mxu0 0.0
        %1202 = vmatprep.subr.mxu0 0.0
        %1203 = vmatpush1.msra.mxu0 0.0
        %1204 = vmatprep.subr.mxu0 0.0
        %1205 = vmatpush1.msra.mxu0 0.0
        %1206 = vmatprep.subr.mxu0 0.0
        %1207 = vmatpush1.msra.mxu0 0.0
        %1208 = vmatprep.subr.mxu0 0.0
        %1209 = vmatpush1.msra.mxu0 0.0
        %1210 = vmatprep.subr.mxu0 0.0
        %1211 = vmatpush1.msra.mxu0 0.0
        %1212 = vmatprep.subr.mxu0 0.0
        %1213 = vmatpush1.msra.mxu0 0.0
        %1214 = vmatprep.subr.mxu0 0.0
        %1215 = vmatpush1.msra.mxu0 0.0
        %1216 = vmatprep.subr.mxu0 0.0
        %1217 = vmatpush1.msra.mxu0 0.0
        %1218 = vmatprep.subr.mxu0 0.0
        %1219 = vmatpush1.msra.mxu0 0.0
        %1220 = vmatprep.subr.mxu0 0.0
        %1221 = vmatpush1.msra.mxu0 0.0
        %1222 = vmatprep.subr.mxu0 0.0
        %1223 = vmatpush1.msra.mxu0 0.0
        %1224 = vmatprep.subr.mxu0 0.0
        %1225 = vmatpush1.msra.mxu0 0.0
        %1226 = vmatprep.subr.mxu0 0.0
        %1227 = vmatpush1.msra.mxu0 0.0
        %1228 = vmatprep.subr.mxu0 0.0
        %1229 = vmatpush1.msra.mxu0 0.0
        %1230 = vmatprep.subr.mxu0 0.0
        %1231 = vmatpush1.msra.mxu0 0.0
        %1232 = vmatprep.subr.mxu0 0.0
        %1233 = vmatpush1.msra.mxu0 0.0
        %1234 = vmatprep.subr.mxu0 0.0
        %1235 = vmatpush1.msra.mxu0 0.0
        %1236 = vmatprep.subr.mxu0 0.0
        %1237 = vmatpush1.msra.mxu0 0.0
        %1238 = vmatprep.subr.mxu0 0.0
        %1239 = vmatpush1.msra.mxu0 0.0
        %1240 = vmatprep.mubr.f32.mxu0 0.0
        %1241 = vmatmul.mubr.f32.gmra.mrb[0].mxu0 %v1034
        %v1242 = vpop.f32.mrb[0].mxu0
        %v1243 = vadd.f32 %v882, %v1242
        %v1244 = vpop.f32.mrb[0].mxu0
        %1245 = vdwg.mxu0
        %v1246 = vsel %vm640, %v1103, 0.0
        %1247 = vadd.xlane.f32.xlu0 %v1246
        %v1248 = vpop.xlane.xlu0 %1247
        %v1249 = vsel %vm640, %v1173, 0.0
        %1250 = vadd.xlane.f32.xlu0 %v1249
        %v1251 = vpop.xlane.xlu0 %1250
        %v1252 = vadd.f32 %v1248, %v1251
        %v1253 = vsel %vm640, %v1243, 0.0
        %1254 = vadd.xlane.f32.xlu0 %v1253
        %v1255 = vpop.xlane.xlu0 %1254
        %v1256 = vadd.f32 %v1252, %v1255
        %v1257 = vmul.f32 %v1103, %v1103
        %v1258 = vsel %vm640, %v1257, 0.0
        %1259 = vadd.xlane.f32.xlu0 %v1258
        %v1260 = vpop.xlane.xlu0 %1259
        %v1261 = vmul.f32 %v1173, %v1173
        %v1262 = vsel %vm640, %v1261, 0.0
        %1263 = vadd.xlane.f32.xlu0 %v1262
        %v1264 = vpop.xlane.xlu0 %1263
        %v1265 = vadd.f32 %v1260, %v1264
        %v1266 = vmul.f32 %v1243, %v1243
        %v1267 = vsel %vm640, %v1266, 0.0
        %1268 = vadd.xlane.f32.xlu0 %v1267
        %v1269 = vpop.xlane.xlu0 %1268
        %v1270 = vadd.f32 %v1265, %v1269
        %v1271 = vmul.f32 %v1256, 0.010416667
        %v1272 = vmul.f32 %v1270, 0.010416667
        %v1273 = vmul.f32 %v1271, %v1271
        %v1274 = vsub.f32 %v1272, %v1273
        %v1275 = vadd.f32 %v1274, 1e-05
        %v1276 = vrsqrt.pop %v1275
        %v1277 = vsub.f32 %v1103, %v1271
        %v1278 = vmul.f32 %v1277, %v1276
        %v1279 = vmul.f32 %v1278, %v697
        %v1280 = vadd.f32 %v1279, %v704
        %v1281 = vsub.f32 %v1173, %v1271
        %v1282 = vmul.f32 %v1281, %v1276
        %v1283 = vmul.f32 %v1282, %v992
        %v1284 = vadd.f32 %v1283, %v996
        %v1285 = vsub.f32 %v1243, %v1271
        %v1286 = vmul.f32 %v1285, %v1276
        %v1287 = vmul.f32 %v1286, %v1002
        %v1288 = vadd.f32 %v1287, %v1006
        %s1289 = scalar_lea.vmem [#allocation2], 8
        %v1290 = vld [vmem:[%s1289] sm:$0xff]
        %v1291 = vadd.f32 %v1290, %v1280
        %v1292 = vxor.u32 %v1291, 2147483648
        %v1293 = vmul.f32 %v1292, 1.442695
        %v1294 = vpow.pop %v1293
        %v1295 = vadd.f32 %v1294, 1.0
        %v1296 = vrcp.pop %v1295
        %v1297 = vmul.f32 1.0, %v1296
        %s1298 = scalar_lea.vmem [#allocation3], 8
        %v1299 = vld [vmem:[%s1298] sm:$0xff]
        %v1300 = vadd.f32 %v1299, %v1284
        %v1301 = vxor.u32 %v1300, 2147483648
        %v1302 = vmul.f32 %v1301, 1.442695
        %v1303 = vpow.pop %v1302
        %v1304 = vadd.f32 %v1303, 1.0
        %v1305 = vrcp.pop %v1304
        %v1306 = vmul.f32 1.0, %v1305
        %s1307 = scalar_lea.vmem [#allocation4], 8
        %v1308 = vld [vmem:[%s1307] sm:$0xff]
        %v1309 = vmul.f32 %v1297, %v1288
        %v1310 = vadd.f32 %v1308, %v1309
        %v1311 = vtanh.pop %v1310
        %v1312 = vsub.f32 %v1031, %v1311
        %v1313 = vmul.f32 %v1306, %v1312
        %v1314 = vadd.f32 %v1311, %v1313
        %s1315 = scalar_lea.vmem %s443, 8 [#allocation14]
        %1316 = vst.msk [vmem:[%s1315] sm:$0xff] %vm640, %v1314
        %v1318 = vsel %vm640, %v1314, 0
        %1320 = vmatprep.subr.mxu0 0.0
        %1321 = vmatpush1.msra.mxu0 %v681
        %1322 = vmatprep.subr.mxu0 0.0
        %1323 = vmatpush1.msra.mxu0 %v682
        %1324 = vmatprep.subr.mxu0 0.0
        %1325 = vmatpush1.msra.mxu0 %v683
        %1326 = vmatprep.subr.mxu0 0.0
        %1327 = vmatpush1.msra.mxu0 %v684
        %1328 = vmatprep.subr.mxu0 0.0
        %1329 = vmatpush1.msra.mxu0 0.0
        %1330 = vmatprep.subr.mxu0 0.0
        %1331 = vmatpush1.msra.mxu0 0.0
        %1332 = vmatprep.subr.mxu0 0.0
        %1333 = vmatpush1.msra.mxu0 0.0
        %1334 = vmatprep.subr.mxu0 0.0
        %1335 = vmatpush1.msra.mxu0 0.0
        %1336 = vmatprep.subr.mxu0 0.0
        %1337 = vmatpush1.msra.mxu0 0.0
        %1338 = vmatprep.subr.mxu0 0.0
        %1339 = vmatpush1.msra.mxu0 0.0
        %1340 = vmatprep.subr.mxu0 0.0
        %1341 = vmatpush1.msra.mxu0 0.0
        %1342 = vmatprep.subr.mxu0 0.0
        %1343 = vmatpush1.msra.mxu0 0.0
        %1344 = vmatprep.subr.mxu0 0.0
        %1345 = vmatpush1.msra.mxu0 0.0
        %1346 = vmatprep.subr.mxu0 0.0
        %1347 = vmatpush1.msra.mxu0 0.0
        %1348 = vmatprep.subr.mxu0 0.0
        %1349 = vmatpush1.msra.mxu0 0.0
        %1350 = vmatprep.subr.mxu0 0.0
        %1351 = vmatpush1.msra.mxu0 0.0
        %1352 = vmatprep.subr.mxu0 0.0
        %1353 = vmatpush1.msra.mxu0 0.0
        %1354 = vmatprep.subr.mxu0 0.0
        %1355 = vmatpush1.msra.mxu0 0.0
        %1356 = vmatprep.subr.mxu0 0.0
        %1357 = vmatpush1.msra.mxu0 0.0
        %1358 = vmatprep.subr.mxu0 0.0
        %1359 = vmatpush1.msra.mxu0 0.0
        %1360 = vmatprep.subr.mxu0 0.0
        %1361 = vmatpush1.msra.mxu0 0.0
        %1362 = vmatprep.subr.mxu0 0.0
        %1363 = vmatpush1.msra.mxu0 0.0
        %1364 = vmatprep.subr.mxu0 0.0
        %1365 = vmatpush1.msra.mxu0 0.0
        %1366 = vmatprep.subr.mxu0 0.0
        %1367 = vmatpush1.msra.mxu0 0.0
        %1368 = vmatprep.subr.mxu0 0.0
        %1369 = vmatpush1.msra.mxu0 0.0
        %1370 = vmatprep.subr.mxu0 0.0
        %1371 = vmatpush1.msra.mxu0 0.0
        %1372 = vmatprep.subr.mxu0 0.0
        %1373 = vmatpush1.msra.mxu0 0.0
        %1374 = vmatprep.subr.mxu0 0.0
        %1375 = vmatpush1.msra.mxu0 0.0
        %1376 = vmatprep.subr.mxu0 0.0
        %1377 = vmatpush1.msra.mxu0 0.0
        %1378 = vmatprep.subr.mxu0 0.0
        %1379 = vmatpush1.msra.mxu0 0.0
        %1380 = vmatprep.subr.mxu0 0.0
        %1381 = vmatpush1.msra.mxu0 0.0
        %1382 = vmatprep.subr.mxu0 0.0
        %1383 = vmatpush1.msra.mxu0 0.0
        %1384 = vmatprep.mubr.f32.mxu0 0.0
        %1385 = vmatmul.mubr.f32.gmra.mrb[0].mxu0 %v1318
        %v1386 = vpop.f32.mrb[0].mxu0
        %v1387 = vadd.f32 %v690, %v1386
        %v1388 = vpop.f32.mrb[0].mxu0
        %1389 = vdwg.mxu0
        %1390 = vmatprep.subr.mxu0 0.0
        %1391 = vmatpush1.msra.mxu0 %v785
        %1392 = vmatprep.subr.mxu0 0.0
        %1393 = vmatpush1.msra.mxu0 %v787
        %1394 = vmatprep.subr.mxu0 0.0
        %1395 = vmatpush1.msra.mxu0 %v789
        %1396 = vmatprep.subr.mxu0 0.0
        %1397 = vmatpush1.msra.mxu0 %v791
        %1398 = vmatprep.subr.mxu0 0.0
        %1399 = vmatpush1.msra.mxu0 0.0
        %1400 = vmatprep.subr.mxu0 0.0
        %1401 = vmatpush1.msra.mxu0 0.0
        %1402 = vmatprep.subr.mxu0 0.0
        %1403 = vmatpush1.msra.mxu0 0.0
        %1404 = vmatprep.subr.mxu0 0.0
        %1405 = vmatpush1.msra.mxu0 0.0
        %1406 = vmatprep.subr.mxu0 0.0
        %1407 = vmatpush1.msra.mxu0 0.0
        %1408 = vmatprep.subr.mxu0 0.0
        %1409 = vmatpush1.msra.mxu0 0.0
        %1410 = vmatprep.subr.mxu0 0.0
        %1411 = vmatpush1.msra.mxu0 0.0
        %1412 = vmatprep.subr.mxu0 0.0
        %1413 = vmatpush1.msra.mxu0 0.0
        %1414 = vmatprep.subr.mxu0 0.0
        %1415 = vmatpush1.msra.mxu0 0.0
        %1416 = vmatprep.subr.mxu0 0.0
        %1417 = vmatpush1.msra.mxu0 0.0
        %1418 = vmatprep.subr.mxu0 0.0
        %1419 = vmatpush1.msra.mxu0 0.0
        %1420 = vmatprep.subr.mxu0 0.0
        %1421 = vmatpush1.msra.mxu0 0.0
        %1422 = vmatprep.subr.mxu0 0.0
        %1423 = vmatpush1.msra.mxu0 0.0
        %1424 = vmatprep.subr.mxu0 0.0
        %1425 = vmatpush1.msra.mxu0 0.0
        %1426 = vmatprep.subr.mxu0 0.0
        %1427 = vmatpush1.msra.mxu0 0.0
        %1428 = vmatprep.subr.mxu0 0.0
        %1429 = vmatpush1.msra.mxu0 0.0
        %1430 = vmatprep.subr.mxu0 0.0
        %1431 = vmatpush1.msra.mxu0 0.0
        %1432 = vmatprep.subr.mxu0 0.0
        %1433 = vmatpush1.msra.mxu0 0.0
        %1434 = vmatprep.subr.mxu0 0.0
        %1435 = vmatpush1.msra.mxu0 0.0
        %1436 = vmatprep.subr.mxu0 0.0
        %1437 = vmatpush1.msra.mxu0 0.0
        %1438 = vmatprep.subr.mxu0 0.0
        %1439 = vmatpush1.msra.mxu0 0.0
        %1440 = vmatprep.subr.mxu0 0.0
        %1441 = vmatpush1.msra.mxu0 0.0
        %1442 = vmatprep.subr.mxu0 0.0
        %1443 = vmatpush1.msra.mxu0 0.0
        %1444 = vmatprep.subr.mxu0 0.0
        %1445 = vmatpush1.msra.mxu0 0.0
        %1446 = vmatprep.subr.mxu0 0.0
        %1447 = vmatpush1.msra.mxu0 0.0
        %1448 = vmatprep.subr.mxu0 0.0
        %1449 = vmatpush1.msra.mxu0 0.0
        %1450 = vmatprep.subr.mxu0 0.0
        %1451 = vmatpush1.msra.mxu0 0.0
        %1452 = vmatprep.subr.mxu0 0.0
        %1453 = vmatpush1.msra.mxu0 0.0
        %1454 = vmatprep.mubr.f32.mxu0 0.0
        %1455 = vmatmul.mubr.f32.gmra.mrb[0].mxu0 %v1318
        %v1456 = vpop.f32.mrb[0].mxu0
        %v1457 = vadd.f32 %v797, %v1456
        %v1458 = vpop.f32.mrb[0].mxu0
        %1459 = vdwg.mxu0
        %1460 = vmatprep.subr.mxu0 0.0
        %1461 = vmatpush1.msra.mxu0 %v870
        %1462 = vmatprep.subr.mxu0 0.0
        %1463 = vmatpush1.msra.mxu0 %v872
        %1464 = vmatprep.subr.mxu0 0.0
        %1465 = vmatpush1.msra.mxu0 %v874
        %1466 = vmatprep.subr.mxu0 0.0
        %1467 = vmatpush1.msra.mxu0 %v876
        %1468 = vmatprep.subr.mxu0 0.0
        %1469 = vmatpush1.msra.mxu0 0.0
        %1470 = vmatprep.subr.mxu0 0.0
        %1471 = vmatpush1.msra.mxu0 0.0
        %1472 = vmatprep.subr.mxu0 0.0
        %1473 = vmatpush1.msra.mxu0 0.0
        %1474 = vmatprep.subr.mxu0 0.0
        %1475 = vmatpush1.msra.mxu0 0.0
        %1476 = vmatprep.subr.mxu0 0.0
        %1477 = vmatpush1.msra.mxu0 0.0
        %1478 = vmatprep.subr.mxu0 0.0
        %1479 = vmatpush1.msra.mxu0 0.0
        %1480 = vmatprep.subr.mxu0 0.0
        %1481 = vmatpush1.msra.mxu0 0.0
        %1482 = vmatprep.subr.mxu0 0.0
        %1483 = vmatpush1.msra.mxu0 0.0
        %1484 = vmatprep.subr.mxu0 0.0
        %1485 = vmatpush1.msra.mxu0 0.0
        %1486 = vmatprep.subr.mxu0 0.0
        %1487 = vmatpush1.msra.mxu0 0.0
        %1488 = vmatprep.subr.mxu0 0.0
        %1489 = vmatpush1.msra.mxu0 0.0
        %1490 = vmatprep.subr.mxu0 0.0
        %1491 = vmatpush1.msra.mxu0 0.0
        %1492 = vmatprep.subr.mxu0 0.0
        %1493 = vmatpush1.msra.mxu0 0.0
        %1494 = vmatprep.subr.mxu0 0.0
        %1495 = vmatpush1.msra.mxu0 0.0
        %1496 = vmatprep.subr.mxu0 0.0
        %1497 = vmatpush1.msra.mxu0 0.0
        %1498 = vmatprep.subr.mxu0 0.0
        %1499 = vmatpush1.msra.mxu0 0.0
        %1500 = vmatprep.subr.mxu0 0.0
        %1501 = vmatpush1.msra.mxu0 0.0
        %1502 = vmatprep.subr.mxu0 0.0
        %1503 = vmatpush1.msra.mxu0 0.0
        %1504 = vmatprep.subr.mxu0 0.0
        %1505 = vmatpush1.msra.mxu0 0.0
        %1506 = vmatprep.subr.mxu0 0.0
        %1507 = vmatpush1.msra.mxu0 0.0
        %1508 = vmatprep.subr.mxu0 0.0
        %1509 = vmatpush1.msra.mxu0 0.0
        %1510 = vmatprep.subr.mxu0 0.0
        %1511 = vmatpush1.msra.mxu0 0.0
        %1512 = vmatprep.subr.mxu0 0.0
        %1513 = vmatpush1.msra.mxu0 0.0
        %1514 = vmatprep.subr.mxu0 0.0
        %1515 = vmatpush1.msra.mxu0 0.0
        %1516 = vmatprep.subr.mxu0 0.0
        %1517 = vmatpush1.msra.mxu0 0.0
        %1518 = vmatprep.subr.mxu0 0.0
        %1519 = vmatpush1.msra.mxu0 0.0
        %1520 = vmatprep.subr.mxu0 0.0
        %1521 = vmatpush1.msra.mxu0 0.0
        %1522 = vmatprep.subr.mxu0 0.0
        %1523 = vmatpush1.msra.mxu0 0.0
        %1524 = vmatprep.mubr.f32.mxu0 0.0
        %1525 = vmatmul.mubr.f32.gmra.mrb[0].mxu0 %v1318
        %v1526 = vpop.f32.mrb[0].mxu0
        %v1527 = vadd.f32 %v882, %v1526
        %v1528 = vpop.f32.mrb[0].mxu0
        %1529 = vdwg.mxu0
        %v1530 = vsel %vm640, %v1387, 0.0
        %1531 = vadd.xlane.f32.xlu0 %v1530
        %v1532 = vpop.xlane.xlu0 %1531
        %v1533 = vsel %vm640, %v1457, 0.0
        %1534 = vadd.xlane.f32.xlu0 %v1533
        %v1535 = vpop.xlane.xlu0 %1534
        %v1536 = vadd.f32 %v1532, %v1535
        %v1537 = vsel %vm640, %v1527, 0.0
        %1538 = vadd.xlane.f32.xlu0 %v1537
        %v1539 = vpop.xlane.xlu0 %1538
        %v1540 = vadd.f32 %v1536, %v1539
        %v1541 = vmul.f32 %v1387, %v1387
        %v1542 = vsel %vm640, %v1541, 0.0
        %1543 = vadd.xlane.f32.xlu0 %v1542
        %v1544 = vpop.xlane.xlu0 %1543
        %v1545 = vmul.f32 %v1457, %v1457
        %v1546 = vsel %vm640, %v1545, 0.0
        %1547 = vadd.xlane.f32.xlu0 %v1546
        %v1548 = vpop.xlane.xlu0 %1547
        %v1549 = vadd.f32 %v1544, %v1548
        %v1550 = vmul.f32 %v1527, %v1527
        %v1551 = vsel %vm640, %v1550, 0.0
        %1552 = vadd.xlane.f32.xlu0 %v1551
        %v1553 = vpop.xlane.xlu0 %1552
        %v1554 = vadd.f32 %v1549, %v1553
        %v1555 = vmul.f32 %v1540, 0.010416667
        %v1556 = vmul.f32 %v1554, 0.010416667
        %v1557 = vmul.f32 %v1555, %v1555
        %v1558 = vsub.f32 %v1556, %v1557
        %v1559 = vadd.f32 %v1558, 1e-05
        %v1560 = vrsqrt.pop %v1559
        %v1561 = vsub.f32 %v1387, %v1555
        %v1562 = vmul.f32 %v1561, %v1560
        %v1563 = vmul.f32 %v1562, %v697
        %v1564 = vadd.f32 %v1563, %v704
        %v1565 = vsub.f32 %v1457, %v1555
        %v1566 = vmul.f32 %v1565, %v1560
        %v1567 = vmul.f32 %v1566, %v992
        %v1568 = vadd.f32 %v1567, %v996
        %v1569 = vsub.f32 %v1527, %v1555
        %v1570 = vmul.f32 %v1569, %v1560
        %v1571 = vmul.f32 %v1570, %v1002
        %v1572 = vadd.f32 %v1571, %v1006
        %s1573 = scalar_lea.vmem [#allocation2], 16
        %v1574 = vld [vmem:[%s1573] sm:$0xff]
        %v1575 = vadd.f32 %v1574, %v1564
        %v1576 = vxor.u32 %v1575, 2147483648
        %v1577 = vmul.f32 %v1576, 1.442695
        %v1578 = vpow.pop %v1577
        %v1579 = vadd.f32 %v1578, 1.0
        %v1580 = vrcp.pop %v1579
        %v1581 = vmul.f32 1.0, %v1580
        %s1582 = scalar_lea.vmem [#allocation3], 16
        %v1583 = vld [vmem:[%s1582] sm:$0xff]
        %v1584 = vadd.f32 %v1583, %v1568
        %v1585 = vxor.u32 %v1584, 2147483648
        %v1586 = vmul.f32 %v1585, 1.442695
        %v1587 = vpow.pop %v1586
        %v1588 = vadd.f32 %v1587, 1.0
        %v1589 = vrcp.pop %v1588
        %v1590 = vmul.f32 1.0, %v1589
        %s1591 = scalar_lea.vmem [#allocation4], 16
        %v1592 = vld [vmem:[%s1591] sm:$0xff]
        %v1593 = vmul.f32 %v1581, %v1572
        %v1594 = vadd.f32 %v1592, %v1593
        %v1595 = vtanh.pop %v1594
        %v1596 = vsub.f32 %v1314, %v1595
        %v1597 = vmul.f32 %v1590, %v1596
        %v1598 = vadd.f32 %v1595, %v1597
        %s1599 = scalar_lea.vmem %s443, 16 [#allocation14]
        %1600 = vst.msk [vmem:[%s1599] sm:$0xff] %vm640, %v1598
        %v1602 = vsel %vm640, %v1598, 0
        %1604 = vmatprep.subr.mxu0 0.0
        %1605 = vmatpush1.msra.mxu0 %v681
        %1606 = vmatprep.subr.mxu0 0.0
        %1607 = vmatpush1.msra.mxu0 %v682
        %1608 = vmatprep.subr.mxu0 0.0
        %1609 = vmatpush1.msra.mxu0 %v683
        %1610 = vmatprep.subr.mxu0 0.0
        %1611 = vmatpush1.msra.mxu0 %v684
        %1612 = vmatprep.subr.mxu0 0.0
        %1613 = vmatpush1.msra.mxu0 0.0
        %1614 = vmatprep.subr.mxu0 0.0
        %1615 = vmatpush1.msra.mxu0 0.0
        %1616 = vmatprep.subr.mxu0 0.0
        %1617 = vmatpush1.msra.mxu0 0.0
        %1618 = vmatprep.subr.mxu0 0.0
        %1619 = vmatpush1.msra.mxu0 0.0
        %1620 = vmatprep.subr.mxu0 0.0
        %1621 = vmatpush1.msra.mxu0 0.0
        %1622 = vmatprep.subr.mxu0 0.0
        %1623 = vmatpush1.msra.mxu0 0.0
        %1624 = vmatprep.subr.mxu0 0.0
        %1625 = vmatpush1.msra.mxu0 0.0
        %1626 = vmatprep.subr.mxu0 0.0
        %1627 = vmatpush1.msra.mxu0 0.0
        %1628 = vmatprep.subr.mxu0 0.0
        %1629 = vmatpush1.msra.mxu0 0.0
        %1630 = vmatprep.subr.mxu0 0.0
        %1631 = vmatpush1.msra.mxu0 0.0
        %1632 = vmatprep.subr.mxu0 0.0
        %1633 = vmatpush1.msra.mxu0 0.0
        %1634 = vmatprep.subr.mxu0 0.0
        %1635 = vmatpush1.msra.mxu0 0.0
        %1636 = vmatprep.subr.mxu0 0.0
        %1637 = vmatpush1.msra.mxu0 0.0
        %1638 = vmatprep.subr.mxu0 0.0
        %1639 = vmatpush1.msra.mxu0 0.0
        %1640 = vmatprep.subr.mxu0 0.0
        %1641 = vmatpush1.msra.mxu0 0.0
        %1642 = vmatprep.subr.mxu0 0.0
        %1643 = vmatpush1.msra.mxu0 0.0
        %1644 = vmatprep.subr.mxu0 0.0
        %1645 = vmatpush1.msra.mxu0 0.0
        %1646 = vmatprep.subr.mxu0 0.0
        %1647 = vmatpush1.msra.mxu0 0.0
        %1648 = vmatprep.subr.mxu0 0.0
        %1649 = vmatpush1.msra.mxu0 0.0
        %1650 = vmatprep.subr.mxu0 0.0
        %1651 = vmatpush1.msra.mxu0 0.0
        %1652 = vmatprep.subr.mxu0 0.0
        %1653 = vmatpush1.msra.mxu0 0.0
        %1654 = vmatprep.subr.mxu0 0.0
        %1655 = vmatpush1.msra.mxu0 0.0
        %1656 = vmatprep.subr.mxu0 0.0
        %1657 = vmatpush1.msra.mxu0 0.0
        %1658 = vmatprep.subr.mxu0 0.0
        %1659 = vmatpush1.msra.mxu0 0.0
        %1660 = vmatprep.subr.mxu0 0.0
        %1661 = vmatpush1.msra.mxu0 0.0
        %1662 = vmatprep.subr.mxu0 0.0
        %1663 = vmatpush1.msra.mxu0 0.0
        %1664 = vmatprep.subr.mxu0 0.0
        %1665 = vmatpush1.msra.mxu0 0.0
        %1666 = vmatprep.subr.mxu0 0.0
        %1667 = vmatpush1.msra.mxu0 0.0
        %1668 = vmatprep.mubr.f32.mxu0 0.0
        %1669 = vmatmul.mubr.f32.gmra.mrb[0].mxu0 %v1602
        %v1670 = vpop.f32.mrb[0].mxu0
        %v1671 = vadd.f32 %v690, %v1670
        %v1672 = vpop.f32.mrb[0].mxu0
        %1673 = vdwg.mxu0
        %1674 = vmatprep.subr.mxu0 0.0
        %1675 = vmatpush1.msra.mxu0 %v785
        %1676 = vmatprep.subr.mxu0 0.0
        %1677 = vmatpush1.msra.mxu0 %v787
        %1678 = vmatprep.subr.mxu0 0.0
        %1679 = vmatpush1.msra.mxu0 %v789
        %1680 = vmatprep.subr.mxu0 0.0
        %1681 = vmatpush1.msra.mxu0 %v791
        %1682 = vmatprep.subr.mxu0 0.0
        %1683 = vmatpush1.msra.mxu0 0.0
        %1684 = vmatprep.subr.mxu0 0.0
        %1685 = vmatpush1.msra.mxu0 0.0
        %1686 = vmatprep.subr.mxu0 0.0
        %1687 = vmatpush1.msra.mxu0 0.0
        %1688 = vmatprep.subr.mxu0 0.0
        %1689 = vmatpush1.msra.mxu0 0.0
        %1690 = vmatprep.subr.mxu0 0.0
        %1691 = vmatpush1.msra.mxu0 0.0
        %1692 = vmatprep.subr.mxu0 0.0
        %1693 = vmatpush1.msra.mxu0 0.0
        %1694 = vmatprep.subr.mxu0 0.0
        %1695 = vmatpush1.msra.mxu0 0.0
        %1696 = vmatprep.subr.mxu0 0.0
        %1697 = vmatpush1.msra.mxu0 0.0
        %1698 = vmatprep.subr.mxu0 0.0
        %1699 = vmatpush1.msra.mxu0 0.0
        %1700 = vmatprep.subr.mxu0 0.0
        %1701 = vmatpush1.msra.mxu0 0.0
        %1702 = vmatprep.subr.mxu0 0.0
        %1703 = vmatpush1.msra.mxu0 0.0
        %1704 = vmatprep.subr.mxu0 0.0
        %1705 = vmatpush1.msra.mxu0 0.0
        %1706 = vmatprep.subr.mxu0 0.0
        %1707 = vmatpush1.msra.mxu0 0.0
        %1708 = vmatprep.subr.mxu0 0.0
        %1709 = vmatpush1.msra.mxu0 0.0
        %1710 = vmatprep.subr.mxu0 0.0
        %1711 = vmatpush1.msra.mxu0 0.0
        %1712 = vmatprep.subr.mxu0 0.0
        %1713 = vmatpush1.msra.mxu0 0.0
        %1714 = vmatprep.subr.mxu0 0.0
        %1715 = vmatpush1.msra.mxu0 0.0
        %1716 = vmatprep.subr.mxu0 0.0
        %1717 = vmatpush1.msra.mxu0 0.0
        %1718 = vmatprep.subr.mxu0 0.0
        %1719 = vmatpush1.msra.mxu0 0.0
        %1720 = vmatprep.subr.mxu0 0.0
        %1721 = vmatpush1.msra.mxu0 0.0
        %1722 = vmatprep.subr.mxu0 0.0
        %1723 = vmatpush1.msra.mxu0 0.0
        %1724 = vmatprep.subr.mxu0 0.0
        %1725 = vmatpush1.msra.mxu0 0.0
        %1726 = vmatprep.subr.mxu0 0.0
        %1727 = vmatpush1.msra.mxu0 0.0
        %1728 = vmatprep.subr.mxu0 0.0
        %1729 = vmatpush1.msra.mxu0 0.0
        %1730 = vmatprep.subr.mxu0 0.0
        %1731 = vmatpush1.msra.mxu0 0.0
        %1732 = vmatprep.subr.mxu0 0.0
        %1733 = vmatpush1.msra.mxu0 0.0
        %1734 = vmatprep.subr.mxu0 0.0
        %1735 = vmatpush1.msra.mxu0 0.0
        %1736 = vmatprep.subr.mxu0 0.0
        %1737 = vmatpush1.msra.mxu0 0.0
        %1738 = vmatprep.mubr.f32.mxu0 0.0
        %1739 = vmatmul.mubr.f32.gmra.mrb[0].mxu0 %v1602
        %v1740 = vpop.f32.mrb[0].mxu0
        %v1741 = vadd.f32 %v797, %v1740
        %v1742 = vpop.f32.mrb[0].mxu0
        %1743 = vdwg.mxu0
        %1744 = vmatprep.subr.mxu0 0.0
        %1745 = vmatpush1.msra.mxu0 %v870
        %1746 = vmatprep.subr.mxu0 0.0
        %1747 = vmatpush1.msra.mxu0 %v872
        %1748 = vmatprep.subr.mxu0 0.0
        %1749 = vmatpush1.msra.mxu0 %v874
        %1750 = vmatprep.subr.mxu0 0.0
        %1751 = vmatpush1.msra.mxu0 %v876
        %1752 = vmatprep.subr.mxu0 0.0
        %1753 = vmatpush1.msra.mxu0 0.0
        %1754 = vmatprep.subr.mxu0 0.0
        %1755 = vmatpush1.msra.mxu0 0.0
        %1756 = vmatprep.subr.mxu0 0.0
        %1757 = vmatpush1.msra.mxu0 0.0
        %1758 = vmatprep.subr.mxu0 0.0
        %1759 = vmatpush1.msra.mxu0 0.0
        %1760 = vmatprep.subr.mxu0 0.0
        %1761 = vmatpush1.msra.mxu0 0.0
        %1762 = vmatprep.subr.mxu0 0.0
        %1763 = vmatpush1.msra.mxu0 0.0
        %1764 = vmatprep.subr.mxu0 0.0
        %1765 = vmatpush1.msra.mxu0 0.0
        %1766 = vmatprep.subr.mxu0 0.0
        %1767 = vmatpush1.msra.mxu0 0.0
        %1768 = vmatprep.subr.mxu0 0.0
        %1769 = vmatpush1.msra.mxu0 0.0
        %1770 = vmatprep.subr.mxu0 0.0
        %1771 = vmatpush1.msra.mxu0 0.0
        %1772 = vmatprep.subr.mxu0 0.0
        %1773 = vmatpush1.msra.mxu0 0.0
        %1774 = vmatprep.subr.mxu0 0.0
        %1775 = vmatpush1.msra.mxu0 0.0
        %1776 = vmatprep.subr.mxu0 0.0
        %1777 = vmatpush1.msra.mxu0 0.0
        %1778 = vmatprep.subr.mxu0 0.0
        %1779 = vmatpush1.msra.mxu0 0.0
        %1780 = vmatprep.subr.mxu0 0.0
        %1781 = vmatpush1.msra.mxu0 0.0
        %1782 = vmatprep.subr.mxu0 0.0
        %1783 = vmatpush1.msra.mxu0 0.0
        %1784 = vmatprep.subr.mxu0 0.0
        %1785 = vmatpush1.msra.mxu0 0.0
        %1786 = vmatprep.subr.mxu0 0.0
        %1787 = vmatpush1.msra.mxu0 0.0
        %1788 = vmatprep.subr.mxu0 0.0
        %1789 = vmatpush1.msra.mxu0 0.0
        %1790 = vmatprep.subr.mxu0 0.0
        %1791 = vmatpush1.msra.mxu0 0.0
        %1792 = vmatprep.subr.mxu0 0.0
        %1793 = vmatpush1.msra.mxu0 0.0
        %1794 = vmatprep.subr.mxu0 0.0
        %1795 = vmatpush1.msra.mxu0 0.0
        %1796 = vmatprep.subr.mxu0 0.0
        %1797 = vmatpush1.msra.mxu0 0.0
        %1798 = vmatprep.subr.mxu0 0.0
        %1799 = vmatpush1.msra.mxu0 0.0
        %1800 = vmatprep.subr.mxu0 0.0
        %1801 = vmatpush1.msra.mxu0 0.0
        %1802 = vmatprep.subr.mxu0 0.0
        %1803 = vmatpush1.msra.mxu0 0.0
        %1804 = vmatprep.subr.mxu0 0.0
        %1805 = vmatpush1.msra.mxu0 0.0
        %1806 = vmatprep.subr.mxu0 0.0
        %1807 = vmatpush1.msra.mxu0 0.0
        %1808 = vmatprep.mubr.f32.mxu0 0.0
        %1809 = vmatmul.mubr.f32.gmra.mrb[0].mxu0 %v1602
        %v1810 = vpop.f32.mrb[0].mxu0
        %v1811 = vadd.f32 %v882, %v1810
        %v1812 = vpop.f32.mrb[0].mxu0
        %1813 = vdwg.mxu0
        %v1814 = vsel %vm640, %v1671, 0.0
        %1815 = vadd.xlane.f32.xlu0 %v1814
        %v1816 = vpop.xlane.xlu0 %1815
        %v1817 = vsel %vm640, %v1741, 0.0
        %1818 = vadd.xlane.f32.xlu0 %v1817
        %v1819 = vpop.xlane.xlu0 %1818
        %v1820 = vadd.f32 %v1816, %v1819
        %v1821 = vsel %vm640, %v1811, 0.0
        %1822 = vadd.xlane.f32.xlu0 %v1821
        %v1823 = vpop.xlane.xlu0 %1822
        %v1824 = vadd.f32 %v1820, %v1823
        %v1825 = vmul.f32 %v1671, %v1671
        %v1826 = vsel %vm640, %v1825, 0.0
        %1827 = vadd.xlane.f32.xlu0 %v1826
        %v1828 = vpop.xlane.xlu0 %1827
        %v1829 = vmul.f32 %v1741, %v1741
        %v1830 = vsel %vm640, %v1829, 0.0
        %1831 = vadd.xlane.f32.xlu0 %v1830
        %v1832 = vpop.xlane.xlu0 %1831
        %v1833 = vadd.f32 %v1828, %v1832
        %v1834 = vmul.f32 %v1811, %v1811
        %v1835 = vsel %vm640, %v1834, 0.0
        %1836 = vadd.xlane.f32.xlu0 %v1835
        %v1837 = vpop.xlane.xlu0 %1836
        %v1838 = vadd.f32 %v1833, %v1837
        %v1839 = vmul.f32 %v1824, 0.010416667
        %v1840 = vmul.f32 %v1838, 0.010416667
        %v1841 = vmul.f32 %v1839, %v1839
        %v1842 = vsub.f32 %v1840, %v1841
        %v1843 = vadd.f32 %v1842, 1e-05
        %v1844 = vrsqrt.pop %v1843
        %v1845 = vsub.f32 %v1671, %v1839
        %v1846 = vmul.f32 %v1845, %v1844
        %v1847 = vmul.f32 %v1846, %v697
        %v1848 = vadd.f32 %v1847, %v704
        %v1849 = vsub.f32 %v1741, %v1839
        %v1850 = vmul.f32 %v1849, %v1844
        %v1851 = vmul.f32 %v1850, %v992
        %v1852 = vadd.f32 %v1851, %v996
        %v1853 = vsub.f32 %v1811, %v1839
        %v1854 = vmul.f32 %v1853, %v1844
        %v1855 = vmul.f32 %v1854, %v1002
        %v1856 = vadd.f32 %v1855, %v1006
        %s1857 = scalar_lea.vmem [#allocation2], 24
        %v1858 = vld [vmem:[%s1857] sm:$0xff]
        %v1859 = vadd.f32 %v1858, %v1848
        %v1860 = vxor.u32 %v1859, 2147483648
        %v1861 = vmul.f32 %v1860, 1.442695
        %v1862 = vpow.pop %v1861
        %v1863 = vadd.f32 %v1862, 1.0
        %v1864 = vrcp.pop %v1863
        %v1865 = vmul.f32 1.0, %v1864
        %s1866 = scalar_lea.vmem [#allocation3], 24
        %v1867 = vld [vmem:[%s1866] sm:$0xff]
        %v1868 = vadd.f32 %v1867, %v1852
        %v1869 = vxor.u32 %v1868, 2147483648
        %v1870 = vmul.f32 %v1869, 1.442695
        %v1871 = vpow.pop %v1870
        %v1872 = vadd.f32 %v1871, 1.0
        %v1873 = vrcp.pop %v1872
        %v1874 = vmul.f32 1.0, %v1873
        %s1875 = scalar_lea.vmem [#allocation4], 24
        %v1876 = vld [vmem:[%s1875] sm:$0xff]
        %v1877 = vmul.f32 %v1865, %v1856
        %v1878 = vadd.f32 %v1876, %v1877
        %v1879 = vtanh.pop %v1878
        %v1880 = vsub.f32 %v1598, %v1879
        %v1881 = vmul.f32 %v1874, %v1880
        %v1882 = vadd.f32 %v1879, %v1881
        %s1883 = scalar_lea.vmem %s443, 24 [#allocation14]
        %1884 = vst.msk [vmem:[%s1883] sm:$0xff] %vm640, %v1882
        %1885 = vst.msk [vmem:[#allocation5] sm:$0xff] %vm640, %v1882
        %s1886 = sand.u32 %s273, 1
        %s1887 = scalar_lea.sflag [#allocation8], %s1886
        %s1888 = sand.u32 %s273, 1
        %s1889 = smul.addr %s1888, 32
        %s1890 = scalar_lea.vmem [#allocation14], %s1889
        // Predicated region
        $region81: #{tpu_custom_call.1} parent=59 // pred_check
          %p1891 = pneg %p283
        $region82: #{tpu_custom_call.1} parent=59 // pred_check_branch
          %1893 = sbr.rel (%p1891) target = $region84
        $region83: #{tpu_custom_call.1} parent=59 // pred_region
          %s1894 = smul.u32 4, %s34
          %s1896 = ssub.s32 512, 512
          %1897 = vsyncadd %s1887, %s1896
          %s1898 = sadd.s32 %s33, %s1894
          %s1899 = smul.addr %s1898, 128
          %s1900 = scalar_lea.hbm %s10, %s1899
          %s1901 = sshll.u32 %s1890, 4
          %s1902 = int_to_ptr.vmem [resolvable:$true] %s1901
          %1907 = dma.vmem_to_hbm [thread:$0]  %s1902, 512, %s1900, %s1887, 128, 128, 8
        $region84: #{tpu_custom_call.1} parent=59 // pred_fallthru
          _
      $region60: #{tpu_custom_call.1} parent=5 // pred_fallthru
        _
      %p1908 = scmp.le.s32.totalorder 2, %s24
      // Predicated region
      $region85: #{tpu_custom_call.1} parent=5 // pred_check
        %p1909 = pneg %p1908
      $region86: #{tpu_custom_call.1} parent=5 // pred_check_branch
        %1911 = sbr.rel (%p1909) target = $region88
      $region87: #{tpu_custom_call.1} parent=5 // pred_region
        %s1912 = ssub.s32 %s24, 2
        // Predicated region
        $region89: #{tpu_custom_call.1} parent=87 // pred_check
          %p1913 = pneg %p289
        $region90: #{tpu_custom_call.1} parent=87 // pred_check_branch
          %1915 = sbr.rel (%p1913) target = $region92
        $region91: #{tpu_custom_call.1} parent=87 // pred_region
          %s1916 = sand.u32 %s274, 1
          %s1917 = scalar_lea.sflag [#allocation8], %s1916
          %s1918 = sand.u32 %s274, 1
          %s1919 = smul.addr %s1918, 32
          %s1920 = scalar_lea.vmem [#allocation14], %s1919
          %1921 = dma.done %s1917, 512
        $region92: #{tpu_custom_call.1} parent=87 // pred_fallthru
          _
      $region88: #{tpu_custom_call.1} parent=5 // pred_fallthru
        _
    $region6: #{tpu_custom_call.1} parent=1 // loop_footer
      %s28 = sadd.s32 1, %s24
    $region7: #{tpu_custom_call.1} parent=1 // loop_footer_branch
      %23 = sbr.rel target = $region3
    $region8: #{tpu_custom_call.1} parent=1 // loop_exit
      _
    %1922 = vsyncpa [#allocation7], 1
    %s1923 = scalar_lea.sflag [#allocation7], 1
    %1924 = vsyncpa %s1923, 1
    %1925 = vsyncpa [#allocation10], 1
    %1926 = vsyncpa [#allocation13], 1
    %1927 = vsyncpa [#allocation8], 1
    %s1928 = scalar_lea.sflag [#allocation8], 1
    %1929 = vsyncpa %s1928, 1

</llo_original>
